<compile_context>
chip_gen: v7x
topology: tpu7x:2x2x1
jax: 0.10.0
libtpu: 0.0.40
codegen_flags: <defaults>
</compile_context>

<pallas_src>
import jax
import jax.numpy as jnp
from jax.experimental import pallas as pl
from jax.experimental.pallas import tpu as pltpu


# ----------------------------------------------------------------------------
# model hyper-params (defaults of BuildModel)
# ----------------------------------------------------------------------------
INPUT_SIZE = 5
EMBED_SIZE = 16
HIDDEN_SIZE = 8          # GRU hidden; bidirectional -> 2H features
OUTPUT_SIZE = 10
LABEL_SIZE = 1
BATCH = 2
SEQ = 8


def dipole_kernel(xc_ref, wx_ref, bx_ref,
                  whh_ref, bhh_ref,
                  wa1_ref, ba1_ref,
                  wo2_ref, wp_ref, bp_ref,
                  out_ref):
    T, B, _ = xc_ref.shape          # time-major combined input (T, B, 2F)
    H2 = whh_ref.shape[0]           # 2H (bi-directional feature width)
    H = H2 // 2
    L = bp_ref.shape[1]

    # ---- 1) folded embedding + input projection, both directions / orders ----
    # columns: [r_f r_b | z_f z_b | n_f n_b]; row block s holds fwd time s and
    # bwd time T-1-s (time reversal baked into xc by the wrapper).
    x2 = xc_ref[...].reshape(T * B, xc_ref.shape[2])
    gi_all = jnp.dot(x2, wx_ref[...], preferred_element_type=jnp.float32) + bx_ref[...]

    whh = whh_ref[...]
    bhh = bhh_ref[...]

    # ---- 2) bidirectional GRU: one block-diag matmul per step, h in registers ----
    h = jnp.zeros((B, H2), jnp.float32)        # [h_f | h_b]
    hs = []
    for s in range(T):                         # T small & static -> unroll
        gi = gi_all[s * B:(s + 1) * B, :]
        gh = jnp.dot(h, whh, preferred_element_type=jnp.float32) + bhh
        rz = jax.nn.sigmoid(gi[:, :2 * H2] + gh[:, :2 * H2])    # one EUP issue
        r = rz[:, :H2]                         # [r_f | r_b]
        z = rz[:, H2:]                         # [z_f | z_b]
        n = jnp.tanh(gi[:, 2 * H2:] + r * gh[:, 2 * H2:])       # [n_f | n_b]
        h = (1.0 - z) * n + z * h
        hs.append(h)

    # Fseq[t] = [h_f(t) | h_b(t)]; backward half of step s corresponds to time T-1-s.
    Fseq = jnp.stack(
        [jnp.concatenate([hs[t][:, :H], hs[T - 1 - t][:, H:]], axis=1)
         for t in range(T)], axis=0)           # (T, B, 2H) time-major bi-GRU features
    F2 = Fseq.reshape(T * B, H2)

    # ---- 3) attention logits + forward half of output head (shared-LHS matmul) ----
    aw = jnp.dot(F2, wa1_ref[...], preferred_element_type=jnp.float32) + ba1_ref[...]
    att = jnp.exp(aw[:, :1])                   # (T*B, 1) location-based attention
    head_f = aw[:, 1:]                         # (T*B, O) = F @ Wo[:2H] + bo

    att_tm = att.reshape(T, B)                                  # (T, B)
    row = jax.lax.broadcasted_iota(jnp.int32, (T, T), 0)        # query time i
    col = jax.lax.broadcasted_iota(jnp.int32, (T, T), 1)        # source time j
    flag = (col < row).astype(jnp.float32)                      # strict lower tri
    G = (att_tm[:, :, None] * Fseq).reshape(T, B * H2)          # att-weighted feats
    combined = jnp.dot(flag, jnp.concatenate([att_tm, G], axis=1),
                       preferred_element_type=jnp.float32)      # (T, B + B*2H)
    accum = combined[:, :B] + 1e-9                              # (T, B)
    numer = combined[:, B:].reshape(T, B, H2)
    weighted = numer * pl.reciprocal(accum, approx=True)[:, :, None]   # (T, B, 2H)

    # ---- 4) output head: tanh(F@Wo1 + W@Wo2 + bo) -> Linear(O->L) -> sum over T ----
    W2 = weighted.reshape(T * B, H2)
    outs = jnp.tanh(head_f
                    + jnp.dot(W2, wo2_ref[...], preferred_element_type=jnp.float32))
    pred = jnp.dot(outs, wp_ref[...], preferred_element_type=jnp.float32) + bp_ref[...]
    out_ref[...] = jnp.sum(pred.reshape(T, B, L), axis=0)       # (B, L)


def build_model_forward(x, params):
    B, T, F = x.shape
    H = HIDDEN_SIZE

    # Time-major input; combined forward/time-reversed copy so one matmul
    # produces the per-step gi for both directions.
    x_tm = jnp.transpose(x, (1, 0, 2))                       # (T, B, F)
    x_comb = jnp.concatenate([x_tm, x_tm[::-1]], axis=-1)    # (T, B, 2F)

    def interleave_cols(wf, wb):
        # wf/wb last dim 3H in [r z n] order -> 6H in [r_f r_b z_f z_b n_f n_b]
        return jnp.concatenate([wf[..., :H], wb[..., :H],
                                wf[..., H:2 * H], wb[..., H:2 * H],
                                wf[..., 2 * H:], wb[..., 2 * H:]], axis=-1)

    # Fold embedding into the GRU input projection (per direction).
    wxa_f = params['we'].T @ params['wih_f'].T               # (F, 3H)
    wxa_b = params['we'].T @ params['wih_b'].T               # (F, 3H)
    bxa_f = params['be'] @ params['wih_f'].T + params['bih_f']   # (3H,)
    bxa_b = params['be'] @ params['wih_b'].T + params['bih_b']   # (3H,)
    zF = jnp.zeros((F, 3 * H), jnp.float32)
    wx = interleave_cols(jnp.concatenate([wxa_f, zF], axis=0),
                         jnp.concatenate([zF, wxa_b], axis=0))        # (2F, 6H)
    bx = interleave_cols(bxa_f[None, :], bxa_b[None, :])              # (1, 6H)

    # Block-diagonal recurrent weight, same gate column order.
    zH = jnp.zeros((H, 3 * H), jnp.float32)
    whh_bd = interleave_cols(jnp.concatenate([params['whh_f'].T, zH], axis=0),
                             jnp.concatenate([zH, params['whh_b'].T], axis=0))  # (2H, 6H)
    bhh_bd = interleave_cols(params['bhh_f'][None, :], params['bhh_b'][None, :])  # (1, 6H)

    # Shared-LHS merge: attention Linear(2H->1) and forward half of output head.
    wo_t = params['wo'].T                                    # (4H, O)
    wa1 = jnp.concatenate([params['watt'].T, wo_t[:2 * H, :]], axis=1)   # (2H, 1+O)
    ba1 = jnp.concatenate([params['batt'], params['bo']])[None, :]       # (1, 1+O)

    kernel_args = (
        x_comb,
        wx, bx,
        whh_bd, bhh_bd,
        wa1, ba1,
        wo_t[2 * H:, :],                 # (2H, O)
        params['wp'].T, params['bp'][None, :],
    )

    # Tiny problem -> single gridless call on one TensorCore; total footprint is
    # a few KiB, so no tiling/pipelining needed.
    return pl.pallas_call(
        dipole_kernel,
        out_shape=jax.ShapeDtypeStruct((B, LABEL_SIZE), jnp.float32),
        in_specs=[pl.BlockSpec(memory_space=pltpu.MemorySpace.VMEM)] * len(kernel_args),
        out_specs=pl.BlockSpec(memory_space=pltpu.MemorySpace.VMEM),
    )(*kernel_args)


# ----------------------------------------------------------------------------
# pure-JAX reference (mirrors the PyTorch forward exactly)
# ----------------------------------------------------------------------------
def ref_forward(x, p):
    B, T, F = x.shape
    H = HIDDEN_SIZE

    emb = (x.reshape(-1, F) @ p['we'].T + p['be']).reshape(B, T, EMBED_SIZE)

    def gru_dir(wih, whh, bih, bhh, reverse):
        h = jnp.zeros((B, H), jnp.float32)
        out = jnp.zeros((B, T, H), jnp.float32)
        ts = range(T - 1, -1, -1) if reverse else range(T)
        for t in ts:
            gi = emb[:, t] @ wih.T + bih
            gh = h @ whh.T + bhh
            r = jax.nn.sigmoid(gi[:, :H] + gh[:, :H])
            z = jax.nn.sigmoid(gi[:, H:2 * H] + gh[:, H:2 * H])
            n = jnp.tanh(gi[:, 2 * H:] + r * gh[:, 2 * H:])
            h = (1 - z) * n + z * h
            out = out.at[:, t].set(h)
        return out

    Ff = gru_dir(p['wih_f'], p['whh_f'], p['bih_f'], p['bhh_f'], False)
    Fb = gru_dir(p['wih_b'], p['whh_b'], p['bih_b'], p['bhh_b'], True)
    Fbt = jnp.concatenate([Ff, Fb], axis=-1)                       # (B, T, 2H)

    att = jnp.exp(Fbt.reshape(-1, 2 * H) @ p['watt'].T + p['batt']).reshape(B, T)
    flag = jnp.triu(jnp.ones((T, T), jnp.float32), k=1).T          # (T, T)
    each = att[:, None, :] * flag[None]
    accum = jnp.sum(each, axis=-1, keepdims=True) + 1e-9
    attw = each / accum
    weighted = jnp.einsum('bij,bjh->bih', attw, Fbt)

    mix = jnp.concatenate([Fbt, weighted], axis=-1).reshape(-1, 4 * H)
    outs = jnp.tanh(mix @ p['wo'].T + p['bo'])
    pred = (outs @ p['wp'].T + p['bp']).reshape(B, T, LABEL_SIZE)
    return jnp.sum(pred, axis=1)


def init_params(key):
    def unif(k, shape, fan_in):
        bound = 1.0 / jnp.sqrt(jnp.float32(fan_in))
        return jax.random.uniform(k, shape, jnp.float32, -bound, bound)

    ks = jax.random.split(key, 20)
    H, E = HIDDEN_SIZE, EMBED_SIZE
    return {
        # embed Linear(input_size -> embed_size), torch layout (out, in)
        'we': unif(ks[0], (E, INPUT_SIZE), INPUT_SIZE),
        'be': unif(ks[1], (E,), INPUT_SIZE),
        # GRU forward direction
        'wih_f': unif(ks[2], (3 * H, E), H),
        'whh_f': unif(ks[3], (3 * H, H), H),
        'bih_f': unif(ks[4], (3 * H,), H),
        'bhh_f': unif(ks[5], (3 * H,), H),
        # GRU backward direction
        'wih_b': unif(ks[6], (3 * H, E), H),
        'whh_b': unif(ks[7], (3 * H, H), H),
        'bih_b': unif(ks[8], (3 * H,), H),
        'bhh_b': unif(ks[9], (3 * H,), H),
        # LocationAttention Linear(2H -> 1)
        'watt': unif(ks[10], (1, 2 * H), 2 * H),
        'batt': unif(ks[11], (1,), 2 * H),
        # output Linear(4H -> output_size)
        'wo': unif(ks[12], (OUTPUT_SIZE, 4 * H), 4 * H),
        'bo': unif(ks[13], (OUTPUT_SIZE,), 4 * H),
        # predict Linear(output_size -> label_size)
        'wp': unif(ks[14], (LABEL_SIZE, OUTPUT_SIZE), OUTPUT_SIZE),
        'bp': unif(ks[15], (LABEL_SIZE,), OUTPUT_SIZE),
    }


if __name__ == "__main__":
    key = jax.random.PRNGKey(0)
    kx, kp = jax.random.split(key)
    x = jax.random.normal(kx, (BATCH, SEQ, INPUT_SIZE), jnp.float32)
    params = init_params(kp)

    out = build_model_forward(x, params)
    out = jax.block_until_ready(out)

    ref = ref_forward(x, params)
    assert out.shape == (BATCH, LABEL_SIZE)
    assert jnp.allclose(out, ref, atol=5e-3, rtol=5e-3), (out, ref)

    print("KERNEL_OK")
</pallas_src>

<mosaic_0001>
module attributes {stable_mosaic.version = 11 : i64} {
  func.func @dipole_kernel(%arg0: memref<8x2x10xf32, #tpu.memory_space<vmem>>, %arg1: memref<10x48xf32, #tpu.memory_space<vmem>>, %arg2: memref<1x48xf32, #tpu.memory_space<vmem>>, %arg3: memref<16x48xf32, #tpu.memory_space<vmem>>, %arg4: memref<1x48xf32, #tpu.memory_space<vmem>>, %arg5: memref<16x11xf32, #tpu.memory_space<vmem>>, %arg6: memref<1x11xf32, #tpu.memory_space<vmem>>, %arg7: memref<16x10xf32, #tpu.memory_space<vmem>>, %arg8: memref<10x1xf32, #tpu.memory_space<vmem>>, %arg9: memref<1x1xf32, #tpu.memory_space<vmem>>, %arg10: memref<2x1xf32, #tpu.memory_space<vmem>>) attributes {dimension_semantics = [], scalar_prefetch = 0 : i64, scratch_operands = 0 : i64, tpu.core_type = #tpu.core_type<tc>} {
    %c0 = arith.constant 0 : index
    %c0_0 = arith.constant 0 : index
    %c0_1 = arith.constant 0 : index
    %0 = vector.load %arg0[%c0, %c0_0, %c0_1] : memref<8x2x10xf32, #tpu.memory_space<vmem>>, vector<8x2x10xf32>
    %1 = vector.shape_cast %0 : vector<8x2x10xf32> to vector<16x10xf32>
    %c0_2 = arith.constant 0 : index
    %c0_3 = arith.constant 0 : index
    %2 = vector.load %arg1[%c0_2, %c0_3] : memref<10x48xf32, #tpu.memory_space<vmem>>, vector<10x48xf32>
    %cst = arith.constant dense<0.000000e+00> : vector<16x48xf32>
    %3 = tpu.matmul %1, %2, %cst {dimension_numbers = #tpu.dot_dimension_numbers<[1], [0], [0], [1], [0, 0, 1, 1], [], []>} : vector<16x10xf32>, vector<10x48xf32>, vector<16x48xf32> -> vector<16x48xf32>
    %c0_4 = arith.constant 0 : index
    %c0_5 = arith.constant 0 : index
    %4 = vector.load %arg2[%c0_4, %c0_5] : memref<1x48xf32, #tpu.memory_space<vmem>>, vector<1x48xf32>
    %5 = vector.broadcast %4 : vector<1x48xf32> to vector<16x48xf32>
    %6 = arith.addf %3, %5 : vector<16x48xf32>
    %c0_6 = arith.constant 0 : index
    %c0_7 = arith.constant 0 : index
    %7 = vector.load %arg3[%c0_6, %c0_7] : memref<16x48xf32, #tpu.memory_space<vmem>>, vector<16x48xf32>
    %c0_8 = arith.constant 0 : index
    %c0_9 = arith.constant 0 : index
    %8 = vector.load %arg4[%c0_8, %c0_9] : memref<1x48xf32, #tpu.memory_space<vmem>>, vector<1x48xf32>
    %cst_10 = arith.constant 0.000000e+00 : f32
    %9 = vector.broadcast %cst_10 : f32 to vector<2x16xf32>
    %10 = vector.extract_strided_slice %6 {offsets = [0, 0], sizes = [2, 48], strides = [1, 1]} : vector<16x48xf32> to vector<2x48xf32>
    %cst_11 = arith.constant dense<0.000000e+00> : vector<2x48xf32>
    %11 = tpu.matmul %9, %7, %cst_11 {dimension_numbers = #tpu.dot_dimension_numbers<[1], [0], [0], [1], [0, 0, 1, 1], [], []>} : vector<2x16xf32>, vector<16x48xf32>, vector<2x48xf32> -> vector<2x48xf32>
    %12 = vector.broadcast %8 : vector<1x48xf32> to vector<2x48xf32>
    %13 = arith.addf %11, %12 : vector<2x48xf32>
    %14 = vector.extract_strided_slice %10 {offsets = [0, 0], sizes = [2, 32], strides = [1, 1]} : vector<2x48xf32> to vector<2x32xf32>
    %15 = vector.extract_strided_slice %13 {offsets = [0, 0], sizes = [2, 32], strides = [1, 1]} : vector<2x48xf32> to vector<2x32xf32>
    %16 = arith.addf %14, %15 : vector<2x32xf32>
    %17 = arith.negf %16 : vector<2x32xf32>
    %18 = math.exp %17 : vector<2x32xf32>
    %cst_12 = arith.constant 1.000000e+00 : f32
    %19 = vector.broadcast %cst_12 : f32 to vector<2x32xf32>
    %20 = arith.addf %19, %18 : vector<2x32xf32>
    %21 = arith.divf %19, %20 : vector<2x32xf32>
    %22 = vector.extract_strided_slice %21 {offsets = [0, 0], sizes = [2, 16], strides = [1, 1]} : vector<2x32xf32> to vector<2x16xf32>
    %23 = vector.extract_strided_slice %21 {offsets = [0, 16], sizes = [2, 16], strides = [1, 1]} : vector<2x32xf32> to vector<2x16xf32>
    %24 = vector.extract_strided_slice %10 {offsets = [0, 32], sizes = [2, 16], strides = [1, 1]} : vector<2x48xf32> to vector<2x16xf32>
    %25 = vector.extract_strided_slice %13 {offsets = [0, 32], sizes = [2, 16], strides = [1, 1]} : vector<2x48xf32> to vector<2x16xf32>
    %26 = arith.mulf %22, %25 : vector<2x16xf32>
    %27 = arith.addf %24, %26 : vector<2x16xf32>
    %28 = math.tanh %27 : vector<2x16xf32>
    %cst_13 = arith.constant 1.000000e+00 : f32
    %29 = vector.broadcast %cst_13 : f32 to vector<2x16xf32>
    %30 = arith.subf %29, %23 : vector<2x16xf32>
    %31 = arith.mulf %30, %28 : vector<2x16xf32>
    %32 = arith.mulf %23, %9 : vector<2x16xf32>
    %33 = arith.addf %31, %32 : vector<2x16xf32>
    %34 = vector.extract_strided_slice %6 {offsets = [2, 0], sizes = [2, 48], strides = [1, 1]} : vector<16x48xf32> to vector<2x48xf32>
    %cst_14 = arith.constant dense<0.000000e+00> : vector<2x48xf32>
    %35 = tpu.matmul %33, %7, %cst_14 {dimension_numbers = #tpu.dot_dimension_numbers<[1], [0], [0], [1], [0, 0, 1, 1], [], []>} : vector<2x16xf32>, vector<16x48xf32>, vector<2x48xf32> -> vector<2x48xf32>
    %36 = vector.broadcast %8 : vector<1x48xf32> to vector<2x48xf32>
    %37 = arith.addf %35, %36 : vector<2x48xf32>
    %38 = vector.extract_strided_slice %34 {offsets = [0, 0], sizes = [2, 32], strides = [1, 1]} : vector<2x48xf32> to vector<2x32xf32>
    %39 = vector.extract_strided_slice %37 {offsets = [0, 0], sizes = [2, 32], strides = [1, 1]} : vector<2x48xf32> to vector<2x32xf32>
    %40 = arith.addf %38, %39 : vector<2x32xf32>
    %41 = arith.negf %40 : vector<2x32xf32>
    %42 = math.exp %41 : vector<2x32xf32>
    %cst_15 = arith.constant 1.000000e+00 : f32
    %43 = vector.broadcast %cst_15 : f32 to vector<2x32xf32>
    %44 = arith.addf %43, %42 : vector<2x32xf32>
    %45 = arith.divf %43, %44 : vector<2x32xf32>
    %46 = vector.extract_strided_slice %45 {offsets = [0, 0], sizes = [2, 16], strides = [1, 1]} : vector<2x32xf32> to vector<2x16xf32>
    %47 = vector.extract_strided_slice %45 {offsets = [0, 16], sizes = [2, 16], strides = [1, 1]} : vector<2x32xf32> to vector<2x16xf32>
    %48 = vector.extract_strided_slice %34 {offsets = [0, 32], sizes = [2, 16], strides = [1, 1]} : vector<2x48xf32> to vector<2x16xf32>
    %49 = vector.extract_strided_slice %37 {offsets = [0, 32], sizes = [2, 16], strides = [1, 1]} : vector<2x48xf32> to vector<2x16xf32>
    %50 = arith.mulf %46, %49 : vector<2x16xf32>
    %51 = arith.addf %48, %50 : vector<2x16xf32>
    %52 = math.tanh %51 : vector<2x16xf32>
    %cst_16 = arith.constant 1.000000e+00 : f32
    %53 = vector.broadcast %cst_16 : f32 to vector<2x16xf32>
    %54 = arith.subf %53, %47 : vector<2x16xf32>
    %55 = arith.mulf %54, %52 : vector<2x16xf32>
    %56 = arith.mulf %47, %33 : vector<2x16xf32>
    %57 = arith.addf %55, %56 : vector<2x16xf32>
    %58 = vector.extract_strided_slice %6 {offsets = [4, 0], sizes = [2, 48], strides = [1, 1]} : vector<16x48xf32> to vector<2x48xf32>
    %cst_17 = arith.constant dense<0.000000e+00> : vector<2x48xf32>
    %59 = tpu.matmul %57, %7, %cst_17 {dimension_numbers = #tpu.dot_dimension_numbers<[1], [0], [0], [1], [0, 0, 1, 1], [], []>} : vector<2x16xf32>, vector<16x48xf32>, vector<2x48xf32> -> vector<2x48xf32>
    %60 = vector.broadcast %8 : vector<1x48xf32> to vector<2x48xf32>
    %61 = arith.addf %59, %60 : vector<2x48xf32>
    %62 = vector.extract_strided_slice %58 {offsets = [0, 0], sizes = [2, 32], strides = [1, 1]} : vector<2x48xf32> to vector<2x32xf32>
    %63 = vector.extract_strided_slice %61 {offsets = [0, 0], sizes = [2, 32], strides = [1, 1]} : vector<2x48xf32> to vector<2x32xf32>
    %64 = arith.addf %62, %63 : vector<2x32xf32>
    %65 = arith.negf %64 : vector<2x32xf32>
    %66 = math.exp %65 : vector<2x32xf32>
    %cst_18 = arith.constant 1.000000e+00 : f32
    %67 = vector.broadcast %cst_18 : f32 to vector<2x32xf32>
    %68 = arith.addf %67, %66 : vector<2x32xf32>
    %69 = arith.divf %67, %68 : vector<2x32xf32>
    %70 = vector.extract_strided_slice %69 {offsets = [0, 0], sizes = [2, 16], strides = [1, 1]} : vector<2x32xf32> to vector<2x16xf32>
    %71 = vector.extract_strided_slice %69 {offsets = [0, 16], sizes = [2, 16], strides = [1, 1]} : vector<2x32xf32> to vector<2x16xf32>
    %72 = vector.extract_strided_slice %58 {offsets = [0, 32], sizes = [2, 16], strides = [1, 1]} : vector<2x48xf32> to vector<2x16xf32>
    %73 = vector.extract_strided_slice %61 {offsets = [0, 32], sizes = [2, 16], strides = [1, 1]} : vector<2x48xf32> to vector<2x16xf32>
    %74 = arith.mulf %70, %73 : vector<2x16xf32>
    %75 = arith.addf %72, %74 : vector<2x16xf32>
    %76 = math.tanh %75 : vector<2x16xf32>
    %cst_19 = arith.constant 1.000000e+00 : f32
    %77 = vector.broadcast %cst_19 : f32 to vector<2x16xf32>
    %78 = arith.subf %77, %71 : vector<2x16xf32>
    %79 = arith.mulf %78, %76 : vector<2x16xf32>
    %80 = arith.mulf %71, %57 : vector<2x16xf32>
    %81 = arith.addf %79, %80 : vector<2x16xf32>
    %82 = vector.extract_strided_slice %6 {offsets = [6, 0], sizes = [2, 48], strides = [1, 1]} : vector<16x48xf32> to vector<2x48xf32>
    %cst_20 = arith.constant dense<0.000000e+00> : vector<2x48xf32>
    %83 = tpu.matmul %81, %7, %cst_20 {dimension_numbers = #tpu.dot_dimension_numbers<[1], [0], [0], [1], [0, 0, 1, 1], [], []>} : vector<2x16xf32>, vector<16x48xf32>, vector<2x48xf32> -> vector<2x48xf32>
    %84 = vector.broadcast %8 : vector<1x48xf32> to vector<2x48xf32>
    %85 = arith.addf %83, %84 : vector<2x48xf32>
    %86 = vector.extract_strided_slice %82 {offsets = [0, 0], sizes = [2, 32], strides = [1, 1]} : vector<2x48xf32> to vector<2x32xf32>
    %87 = vector.extract_strided_slice %85 {offsets = [0, 0], sizes = [2, 32], strides = [1, 1]} : vector<2x48xf32> to vector<2x32xf32>
    %88 = arith.addf %86, %87 : vector<2x32xf32>
    %89 = arith.negf %88 : vector<2x32xf32>
    %90 = math.exp %89 : vector<2x32xf32>
    %cst_21 = arith.constant 1.000000e+00 : f32
    %91 = vector.broadcast %cst_21 : f32 to vector<2x32xf32>
    %92 = arith.addf %91, %90 : vector<2x32xf32>
    %93 = arith.divf %91, %92 : vector<2x32xf32>
    %94 = vector.extract_strided_slice %93 {offsets = [0, 0], sizes = [2, 16], strides = [1, 1]} : vector<2x32xf32> to vector<2x16xf32>
    %95 = vector.extract_strided_slice %93 {offsets = [0, 16], sizes = [2, 16], strides = [1, 1]} : vector<2x32xf32> to vector<2x16xf32>
    %96 = vector.extract_strided_slice %82 {offsets = [0, 32], sizes = [2, 16], strides = [1, 1]} : vector<2x48xf32> to vector<2x16xf32>
    %97 = vector.extract_strided_slice %85 {offsets = [0, 32], sizes = [2, 16], strides = [1, 1]} : vector<2x48xf32> to vector<2x16xf32>
    %98 = arith.mulf %94, %97 : vector<2x16xf32>
    %99 = arith.addf %96, %98 : vector<2x16xf32>
    %100 = math.tanh %99 : vector<2x16xf32>
    %cst_22 = arith.constant 1.000000e+00 : f32
    %101 = vector.broadcast %cst_22 : f32 to vector<2x16xf32>
    %102 = arith.subf %101, %95 : vector<2x16xf32>
    %103 = arith.mulf %102, %100 : vector<2x16xf32>
    %104 = arith.mulf %95, %81 : vector<2x16xf32>
    %105 = arith.addf %103, %104 : vector<2x16xf32>
    %106 = vector.extract_strided_slice %6 {offsets = [8, 0], sizes = [2, 48], strides = [1, 1]} : vector<16x48xf32> to vector<2x48xf32>
    %cst_23 = arith.constant dense<0.000000e+00> : vector<2x48xf32>
    %107 = tpu.matmul %105, %7, %cst_23 {dimension_numbers = #tpu.dot_dimension_numbers<[1], [0], [0], [1], [0, 0, 1, 1], [], []>} : vector<2x16xf32>, vector<16x48xf32>, vector<2x48xf32> -> vector<2x48xf32>
    %108 = vector.broadcast %8 : vector<1x48xf32> to vector<2x48xf32>
    %109 = arith.addf %107, %108 : vector<2x48xf32>
    %110 = vector.extract_strided_slice %106 {offsets = [0, 0], sizes = [2, 32], strides = [1, 1]} : vector<2x48xf32> to vector<2x32xf32>
    %111 = vector.extract_strided_slice %109 {offsets = [0, 0], sizes = [2, 32], strides = [1, 1]} : vector<2x48xf32> to vector<2x32xf32>
    %112 = arith.addf %110, %111 : vector<2x32xf32>
    %113 = arith.negf %112 : vector<2x32xf32>
    %114 = math.exp %113 : vector<2x32xf32>
    %cst_24 = arith.constant 1.000000e+00 : f32
    %115 = vector.broadcast %cst_24 : f32 to vector<2x32xf32>
    %116 = arith.addf %115, %114 : vector<2x32xf32>
    %117 = arith.divf %115, %116 : vector<2x32xf32>
    %118 = vector.extract_strided_slice %117 {offsets = [0, 0], sizes = [2, 16], strides = [1, 1]} : vector<2x32xf32> to vector<2x16xf32>
    %119 = vector.extract_strided_slice %117 {offsets = [0, 16], sizes = [2, 16], strides = [1, 1]} : vector<2x32xf32> to vector<2x16xf32>
    %120 = vector.extract_strided_slice %106 {offsets = [0, 32], sizes = [2, 16], strides = [1, 1]} : vector<2x48xf32> to vector<2x16xf32>
    %121 = vector.extract_strided_slice %109 {offsets = [0, 32], sizes = [2, 16], strides = [1, 1]} : vector<2x48xf32> to vector<2x16xf32>
    %122 = arith.mulf %118, %121 : vector<2x16xf32>
    %123 = arith.addf %120, %122 : vector<2x16xf32>
    %124 = math.tanh %123 : vector<2x16xf32>
    %cst_25 = arith.constant 1.000000e+00 : f32
    %125 = vector.broadcast %cst_25 : f32 to vector<2x16xf32>
    %126 = arith.subf %125, %119 : vector<2x16xf32>
    %127 = arith.mulf %126, %124 : vector<2x16xf32>
    %128 = arith.mulf %119, %105 : vector<2x16xf32>
    %129 = arith.addf %127, %128 : vector<2x16xf32>
    %130 = vector.extract_strided_slice %6 {offsets = [10, 0], sizes = [2, 48], strides = [1, 1]} : vector<16x48xf32> to vector<2x48xf32>
    %cst_26 = arith.constant dense<0.000000e+00> : vector<2x48xf32>
    %131 = tpu.matmul %129, %7, %cst_26 {dimension_numbers = #tpu.dot_dimension_numbers<[1], [0], [0], [1], [0, 0, 1, 1], [], []>} : vector<2x16xf32>, vector<16x48xf32>, vector<2x48xf32> -> vector<2x48xf32>
    %132 = vector.broadcast %8 : vector<1x48xf32> to vector<2x48xf32>
    %133 = arith.addf %131, %132 : vector<2x48xf32>
    %134 = vector.extract_strided_slice %130 {offsets = [0, 0], sizes = [2, 32], strides = [1, 1]} : vector<2x48xf32> to vector<2x32xf32>
    %135 = vector.extract_strided_slice %133 {offsets = [0, 0], sizes = [2, 32], strides = [1, 1]} : vector<2x48xf32> to vector<2x32xf32>
    %136 = arith.addf %134, %135 : vector<2x32xf32>
    %137 = arith.negf %136 : vector<2x32xf32>
    %138 = math.exp %137 : vector<2x32xf32>
    %cst_27 = arith.constant 1.000000e+00 : f32
    %139 = vector.broadcast %cst_27 : f32 to vector<2x32xf32>
    %140 = arith.addf %139, %138 : vector<2x32xf32>
    %141 = arith.divf %139, %140 : vector<2x32xf32>
    %142 = vector.extract_strided_slice %141 {offsets = [0, 0], sizes = [2, 16], strides = [1, 1]} : vector<2x32xf32> to vector<2x16xf32>
    %143 = vector.extract_strided_slice %141 {offsets = [0, 16], sizes = [2, 16], strides = [1, 1]} : vector<2x32xf32> to vector<2x16xf32>
    %144 = vector.extract_strided_slice %130 {offsets = [0, 32], sizes = [2, 16], strides = [1, 1]} : vector<2x48xf32> to vector<2x16xf32>
    %145 = vector.extract_strided_slice %133 {offsets = [0, 32], sizes = [2, 16], strides = [1, 1]} : vector<2x48xf32> to vector<2x16xf32>
    %146 = arith.mulf %142, %145 : vector<2x16xf32>
    %147 = arith.addf %144, %146 : vector<2x16xf32>
    %148 = math.tanh %147 : vector<2x16xf32>
    %cst_28 = arith.constant 1.000000e+00 : f32
    %149 = vector.broadcast %cst_28 : f32 to vector<2x16xf32>
    %150 = arith.subf %149, %143 : vector<2x16xf32>
    %151 = arith.mulf %150, %148 : vector<2x16xf32>
    %152 = arith.mulf %143, %129 : vector<2x16xf32>
    %153 = arith.addf %151, %152 : vector<2x16xf32>
    %154 = vector.extract_strided_slice %6 {offsets = [12, 0], sizes = [2, 48], strides = [1, 1]} : vector<16x48xf32> to vector<2x48xf32>
    %cst_29 = arith.constant dense<0.000000e+00> : vector<2x48xf32>
    %155 = tpu.matmul %153, %7, %cst_29 {dimension_numbers = #tpu.dot_dimension_numbers<[1], [0], [0], [1], [0, 0, 1, 1], [], []>} : vector<2x16xf32>, vector<16x48xf32>, vector<2x48xf32> -> vector<2x48xf32>
    %156 = vector.broadcast %8 : vector<1x48xf32> to vector<2x48xf32>
    %157 = arith.addf %155, %156 : vector<2x48xf32>
    %158 = vector.extract_strided_slice %154 {offsets = [0, 0], sizes = [2, 32], strides = [1, 1]} : vector<2x48xf32> to vector<2x32xf32>
    %159 = vector.extract_strided_slice %157 {offsets = [0, 0], sizes = [2, 32], strides = [1, 1]} : vector<2x48xf32> to vector<2x32xf32>
    %160 = arith.addf %158, %159 : vector<2x32xf32>
    %161 = arith.negf %160 : vector<2x32xf32>
    %162 = math.exp %161 : vector<2x32xf32>
    %cst_30 = arith.constant 1.000000e+00 : f32
    %163 = vector.broadcast %cst_30 : f32 to vector<2x32xf32>
    %164 = arith.addf %163, %162 : vector<2x32xf32>
    %165 = arith.divf %163, %164 : vector<2x32xf32>
    %166 = vector.extract_strided_slice %165 {offsets = [0, 0], sizes = [2, 16], strides = [1, 1]} : vector<2x32xf32> to vector<2x16xf32>
    %167 = vector.extract_strided_slice %165 {offsets = [0, 16], sizes = [2, 16], strides = [1, 1]} : vector<2x32xf32> to vector<2x16xf32>
    %168 = vector.extract_strided_slice %154 {offsets = [0, 32], sizes = [2, 16], strides = [1, 1]} : vector<2x48xf32> to vector<2x16xf32>
    %169 = vector.extract_strided_slice %157 {offsets = [0, 32], sizes = [2, 16], strides = [1, 1]} : vector<2x48xf32> to vector<2x16xf32>
    %170 = arith.mulf %166, %169 : vector<2x16xf32>
    %171 = arith.addf %168, %170 : vector<2x16xf32>
    %172 = math.tanh %171 : vector<2x16xf32>
    %cst_31 = arith.constant 1.000000e+00 : f32
    %173 = vector.broadcast %cst_31 : f32 to vector<2x16xf32>
    %174 = arith.subf %173, %167 : vector<2x16xf32>
    %175 = arith.mulf %174, %172 : vector<2x16xf32>
    %176 = arith.mulf %167, %153 : vector<2x16xf32>
    %177 = arith.addf %175, %176 : vector<2x16xf32>
    %178 = vector.extract_strided_slice %6 {offsets = [14, 0], sizes = [2, 48], strides = [1, 1]} : vector<16x48xf32> to vector<2x48xf32>
    %cst_32 = arith.constant dense<0.000000e+00> : vector<2x48xf32>
    %179 = tpu.matmul %177, %7, %cst_32 {dimension_numbers = #tpu.dot_dimension_numbers<[1], [0], [0], [1], [0, 0, 1, 1], [], []>} : vector<2x16xf32>, vector<16x48xf32>, vector<2x48xf32> -> vector<2x48xf32>
    %180 = vector.broadcast %8 : vector<1x48xf32> to vector<2x48xf32>
    %181 = arith.addf %179, %180 : vector<2x48xf32>
    %182 = vector.extract_strided_slice %178 {offsets = [0, 0], sizes = [2, 32], strides = [1, 1]} : vector<2x48xf32> to vector<2x32xf32>
    %183 = vector.extract_strided_slice %181 {offsets = [0, 0], sizes = [2, 32], strides = [1, 1]} : vector<2x48xf32> to vector<2x32xf32>
    %184 = arith.addf %182, %183 : vector<2x32xf32>
    %185 = arith.negf %184 : vector<2x32xf32>
    %186 = math.exp %185 : vector<2x32xf32>
    %cst_33 = arith.constant 1.000000e+00 : f32
    %187 = vector.broadcast %cst_33 : f32 to vector<2x32xf32>
    %188 = arith.addf %187, %186 : vector<2x32xf32>
    %189 = arith.divf %187, %188 : vector<2x32xf32>
    %190 = vector.extract_strided_slice %189 {offsets = [0, 0], sizes = [2, 16], strides = [1, 1]} : vector<2x32xf32> to vector<2x16xf32>
    %191 = vector.extract_strided_slice %189 {offsets = [0, 16], sizes = [2, 16], strides = [1, 1]} : vector<2x32xf32> to vector<2x16xf32>
    %192 = vector.extract_strided_slice %178 {offsets = [0, 32], sizes = [2, 16], strides = [1, 1]} : vector<2x48xf32> to vector<2x16xf32>
    %193 = vector.extract_strided_slice %181 {offsets = [0, 32], sizes = [2, 16], strides = [1, 1]} : vector<2x48xf32> to vector<2x16xf32>
    %194 = arith.mulf %190, %193 : vector<2x16xf32>
    %195 = arith.addf %192, %194 : vector<2x16xf32>
    %196 = math.tanh %195 : vector<2x16xf32>
    %cst_34 = arith.constant 1.000000e+00 : f32
    %197 = vector.broadcast %cst_34 : f32 to vector<2x16xf32>
    %198 = arith.subf %197, %191 : vector<2x16xf32>
    %199 = arith.mulf %198, %196 : vector<2x16xf32>
    %200 = arith.mulf %191, %177 : vector<2x16xf32>
    %201 = arith.addf %199, %200 : vector<2x16xf32>
    %202 = vector.extract_strided_slice %33 {offsets = [0, 0], sizes = [2, 8], strides = [1, 1]} : vector<2x16xf32> to vector<2x8xf32>
    %203 = vector.extract_strided_slice %201 {offsets = [0, 8], sizes = [2, 8], strides = [1, 1]} : vector<2x16xf32> to vector<2x8xf32>
    %204 = tpu.concatenate %202, %203 in 1 : vector<2x8xf32>, vector<2x8xf32> -> vector<2x16xf32>
    %205 = vector.extract_strided_slice %57 {offsets = [0, 0], sizes = [2, 8], strides = [1, 1]} : vector<2x16xf32> to vector<2x8xf32>
    %206 = vector.extract_strided_slice %177 {offsets = [0, 8], sizes = [2, 8], strides = [1, 1]} : vector<2x16xf32> to vector<2x8xf32>
    %207 = tpu.concatenate %205, %206 in 1 : vector<2x8xf32>, vector<2x8xf32> -> vector<2x16xf32>
    %208 = vector.extract_strided_slice %81 {offsets = [0, 0], sizes = [2, 8], strides = [1, 1]} : vector<2x16xf32> to vector<2x8xf32>
    %209 = vector.extract_strided_slice %153 {offsets = [0, 8], sizes = [2, 8], strides = [1, 1]} : vector<2x16xf32> to vector<2x8xf32>
    %210 = tpu.concatenate %208, %209 in 1 : vector<2x8xf32>, vector<2x8xf32> -> vector<2x16xf32>
    %211 = vector.extract_strided_slice %105 {offsets = [0, 0], sizes = [2, 8], strides = [1, 1]} : vector<2x16xf32> to vector<2x8xf32>
    %212 = vector.extract_strided_slice %129 {offsets = [0, 8], sizes = [2, 8], strides = [1, 1]} : vector<2x16xf32> to vector<2x8xf32>
    %213 = tpu.concatenate %211, %212 in 1 : vector<2x8xf32>, vector<2x8xf32> -> vector<2x16xf32>
    %214 = vector.extract_strided_slice %129 {offsets = [0, 0], sizes = [2, 8], strides = [1, 1]} : vector<2x16xf32> to vector<2x8xf32>
    %215 = vector.extract_strided_slice %105 {offsets = [0, 8], sizes = [2, 8], strides = [1, 1]} : vector<2x16xf32> to vector<2x8xf32>
    %216 = tpu.concatenate %214, %215 in 1 : vector<2x8xf32>, vector<2x8xf32> -> vector<2x16xf32>
    %217 = vector.extract_strided_slice %153 {offsets = [0, 0], sizes = [2, 8], strides = [1, 1]} : vector<2x16xf32> to vector<2x8xf32>
    %218 = vector.extract_strided_slice %81 {offsets = [0, 8], sizes = [2, 8], strides = [1, 1]} : vector<2x16xf32> to vector<2x8xf32>
    %219 = tpu.concatenate %217, %218 in 1 : vector<2x8xf32>, vector<2x8xf32> -> vector<2x16xf32>
    %220 = vector.extract_strided_slice %177 {offsets = [0, 0], sizes = [2, 8], strides = [1, 1]} : vector<2x16xf32> to vector<2x8xf32>
    %221 = vector.extract_strided_slice %57 {offsets = [0, 8], sizes = [2, 8], strides = [1, 1]} : vector<2x16xf32> to vector<2x8xf32>
    %222 = tpu.concatenate %220, %221 in 1 : vector<2x8xf32>, vector<2x8xf32> -> vector<2x16xf32>
    %223 = vector.extract_strided_slice %201 {offsets = [0, 0], sizes = [2, 8], strides = [1, 1]} : vector<2x16xf32> to vector<2x8xf32>
    %224 = vector.extract_strided_slice %33 {offsets = [0, 8], sizes = [2, 8], strides = [1, 1]} : vector<2x16xf32> to vector<2x8xf32>
    %225 = tpu.concatenate %223, %224 in 1 : vector<2x8xf32>, vector<2x8xf32> -> vector<2x16xf32>
    %226 = vector.shape_cast %204 : vector<2x16xf32> to vector<1x2x16xf32>
    %227 = vector.shape_cast %207 : vector<2x16xf32> to vector<1x2x16xf32>
    %228 = vector.shape_cast %210 : vector<2x16xf32> to vector<1x2x16xf32>
    %229 = vector.shape_cast %213 : vector<2x16xf32> to vector<1x2x16xf32>
    %230 = vector.shape_cast %216 : vector<2x16xf32> to vector<1x2x16xf32>
    %231 = vector.shape_cast %219 : vector<2x16xf32> to vector<1x2x16xf32>
    %232 = vector.shape_cast %222 : vector<2x16xf32> to vector<1x2x16xf32>
    %233 = vector.shape_cast %225 : vector<2x16xf32> to vector<1x2x16xf32>
    %234 = tpu.concatenate %226, %227, %228, %229, %230, %231, %232, %233 in 0 : vector<1x2x16xf32>, vector<1x2x16xf32>, vector<1x2x16xf32>, vector<1x2x16xf32>, vector<1x2x16xf32>, vector<1x2x16xf32>, vector<1x2x16xf32>, vector<1x2x16xf32> -> vector<8x2x16xf32>
    %235 = vector.shape_cast %234 : vector<8x2x16xf32> to vector<16x16xf32>
    %c0_35 = arith.constant 0 : index
    %c0_36 = arith.constant 0 : index
    %236 = vector.load %arg5[%c0_35, %c0_36] : memref<16x11xf32, #tpu.memory_space<vmem>>, vector<16x11xf32>
    %cst_37 = arith.constant dense<0.000000e+00> : vector<16x11xf32>
    %237 = tpu.matmul %235, %236, %cst_37 {dimension_numbers = #tpu.dot_dimension_numbers<[1], [0], [0], [1], [0, 0, 1, 1], [], []>} : vector<16x16xf32>, vector<16x11xf32>, vector<16x11xf32> -> vector<16x11xf32>
    %c0_38 = arith.constant 0 : index
    %c0_39 = arith.constant 0 : index
    %238 = vector.load %arg6[%c0_38, %c0_39] : memref<1x11xf32, #tpu.memory_space<vmem>>, vector<1x11xf32>
    %239 = vector.broadcast %238 : vector<1x11xf32> to vector<16x11xf32>
    %240 = arith.addf %237, %239 : vector<16x11xf32>
    %241 = vector.extract_strided_slice %240 {offsets = [0, 0], sizes = [16, 1], strides = [1, 1]} : vector<16x11xf32> to vector<16x1xf32>
    %242 = math.exp %241 : vector<16x1xf32>
    %243 = vector.extract_strided_slice %240 {offsets = [0, 1], sizes = [16, 10], strides = [1, 1]} : vector<16x11xf32> to vector<16x10xf32>
    %244 = vector.shape_cast %242 : vector<16x1xf32> to vector<8x2xf32>
    %245 = tpu.iota {dimensions = array<i32: 0>} : vector<8x8xi32>
    %246 = tpu.iota {dimensions = array<i32: 1>} : vector<8x8xi32>
    %247 = arith.cmpi slt, %246, %245 : vector<8x8xi32>
    %248 = arith.extui %247 : vector<8x8xi1> to vector<8x8xi32>
    %249 = arith.sitofp %248 : vector<8x8xi32> to vector<8x8xf32>
    %250 = vector.shape_cast %244 : vector<8x2xf32> to vector<8x2x1xf32>
    %251 = vector.broadcast %250 : vector<8x2x1xf32> to vector<8x2x16xf32>
    %252 = arith.mulf %251, %234 : vector<8x2x16xf32>
    %253 = vector.shape_cast %252 : vector<8x2x16xf32> to vector<8x32xf32>
    %254 = tpu.concatenate %244, %253 in 1 : vector<8x2xf32>, vector<8x32xf32> -> vector<8x34xf32>
    %cst_40 = arith.constant dense<0.000000e+00> : vector<8x34xf32>
    %255 = tpu.matmul %249, %254, %cst_40 {dimension_numbers = #tpu.dot_dimension_numbers<[1], [0], [0], [1], [0, 0, 1, 1], [], []>} : vector<8x8xf32>, vector<8x34xf32>, vector<8x34xf32> -> vector<8x34xf32>
    %256 = vector.extract_strided_slice %255 {offsets = [0, 0], sizes = [8, 2], strides = [1, 1]} : vector<8x34xf32> to vector<8x2xf32>
    %cst_41 = arith.constant 9.99999971E-10 : f32
    %257 = vector.broadcast %cst_41 : f32 to vector<8x2xf32>
    %258 = arith.addf %256, %257 : vector<8x2xf32>
    %259 = vector.extract_strided_slice %255 {offsets = [0, 2], sizes = [8, 32], strides = [1, 1]} : vector<8x34xf32> to vector<8x32xf32>
    %260 = vector.shape_cast %259 : vector<8x32xf32> to vector<8x2x16xf32>
    %261 = tpu.reciprocal %258 {approx = true} : vector<8x2xf32> -> vector<8x2xf32>
    %262 = vector.shape_cast %261 : vector<8x2xf32> to vector<8x2x1xf32>
    %263 = vector.broadcast %262 : vector<8x2x1xf32> to vector<8x2x16xf32>
    %264 = arith.mulf %260, %263 : vector<8x2x16xf32>
    %265 = vector.shape_cast %264 : vector<8x2x16xf32> to vector<16x16xf32>
    %c0_42 = arith.constant 0 : index
    %c0_43 = arith.constant 0 : index
    %266 = vector.load %arg7[%c0_42, %c0_43] : memref<16x10xf32, #tpu.memory_space<vmem>>, vector<16x10xf32>
    %cst_44 = arith.constant dense<0.000000e+00> : vector<16x10xf32>
    %267 = tpu.matmul %265, %266, %cst_44 {dimension_numbers = #tpu.dot_dimension_numbers<[1], [0], [0], [1], [0, 0, 1, 1], [], []>} : vector<16x16xf32>, vector<16x10xf32>, vector<16x10xf32> -> vector<16x10xf32>
    %268 = arith.addf %243, %267 : vector<16x10xf32>
    %269 = math.tanh %268 : vector<16x10xf32>
    %c0_45 = arith.constant 0 : index
    %c0_46 = arith.constant 0 : index
    %270 = vector.load %arg8[%c0_45, %c0_46] : memref<10x1xf32, #tpu.memory_space<vmem>>, vector<10x1xf32>
    %cst_47 = arith.constant dense<0.000000e+00> : vector<16x1xf32>
    %271 = tpu.matmul %269, %270, %cst_47 {dimension_numbers = #tpu.dot_dimension_numbers<[1], [0], [0], [1], [0, 0, 1, 1], [], []>} : vector<16x10xf32>, vector<10x1xf32>, vector<16x1xf32> -> vector<16x1xf32>
    %c0_48 = arith.constant 0 : index
    %c0_49 = arith.constant 0 : index
    %272 = vector.load %arg9[%c0_48, %c0_49] : memref<1x1xf32, #tpu.memory_space<vmem>>, vector<1x1xf32>
    %273 = vector.broadcast %272 : vector<1x1xf32> to vector<16x1xf32>
    %274 = arith.addf %271, %273 : vector<16x1xf32>
    %275 = vector.shape_cast %274 : vector<16x1xf32> to vector<8x2x1xf32>
    %cst_50 = arith.constant dense<0.000000e+00> : vector<2x1xf32>
    %276 = vector.multi_reduction <add>, %275, %cst_50 [0] : vector<8x2x1xf32> to vector<2x1xf32>
    %c0_51 = arith.constant 0 : index
    %c0_52 = arith.constant 0 : index
    %277 = vector.load %arg10[%c0_51, %c0_52] : memref<2x1xf32, #tpu.memory_space<vmem>>, vector<2x1xf32>
    tpu.vector_store %arg10[%c0_51, %c0_52], %276 {strides = array<i32>} : memref<2x1xf32, #tpu.memory_space<vmem>>, vector<2x1xf32>,
    return
  }
}

</mosaic_0001>

<llo_original>
// kernel: tpu_custom_call.1
$region0: #{tpu_custom_call.1}
  #allocation0 [shape = 'u32[]', space=smem, size = 0x4, offset = 0x4, fixed_abs, tag = 'smem constant byte address 0x4 - core index']
  #allocation1 [shape = 'u32[144,128]{1,0:T(1,128)}', space=vmem, size = 0x12000, scoped, tag = 'internal scratch']
  #allocation2 [shape = 'f32[1,1]{1,0:T(1,128)S(1)}', space=vmem, size = 0x200, scoped, tag = 'scoped memory for tpu_custom_call.1']
  %s0 = inlined_call_operand.vmem [shape: f32[8,2,10], index: 0, kind: input, shape index: {}]
  %s1 = inlined_call_operand.hbm [shape: f32[10,48], index: 1, kind: input, shape index: {}]
  %s2 = inlined_call_operand.hbm [shape: f32[1,48], index: 2, kind: input, shape index: {}]
  %s3 = inlined_call_operand.vmem [shape: f32[16,48], index: 3, kind: input, shape index: {}]
  %s4 = inlined_call_operand.vmem [shape: f32[1,48], index: 4, kind: input, shape index: {}]
  %s5 = inlined_call_operand.hbm [shape: f32[16,11], index: 5, kind: input, shape index: {}]
  %s6 = inlined_call_operand.vmem [shape: f32[1,11], index: 6, kind: input, shape index: {}]
  %s7 = inlined_call_operand.hbm [shape: f32[16,10], index: 7, kind: input, shape index: {}]
  %s8 = inlined_call_operand.vmem [shape: f32[10,1], index: 8, kind: input, shape index: {}]
  %s9 = inlined_call_operand.<no memory space> [shape: f32[1,1], index: 9, kind: input, shape index: {}]
  %s10 = inlined_call_operand.vmem [shape: f32[2,1], index: 10, kind: output, shape index: {}]
  %s11 = sld [smem:[#allocation0]]
  $region66: #{tpu_custom_call.1} parent=0
    _
  %s13 = ssub.s32 1, %s11
  %s14 = scalar_select 0, %s13, %s11
  %v15 = vstv %s9
  %16 = vst [vmem:[#allocation2] sm:$0x1] %v15
  $region1: #{tpu_custom_call.1} parent=0
    #allocation3 [shape = 'u8[8192]{0}', space=vmem, size = 0x2000, scoped, tag = 'input window, operand 1, single buffered']
    #allocation4 [shape = 's32[1]{0}', space=sflag, size = 0x4, scoped, tag = 'scoped memory for tpu_custom_call.1']
    #allocation5 [shape = 'u8[512]{0}', space=vmem, size = 0x400, scoped, tag = 'input window, operand 2, single buffered']
    #allocation6 [shape = 's32[1]{0}', space=sflag, size = 0x4, scoped, tag = 'scoped memory for tpu_custom_call.1']
    #allocation7 [shape = 'u8[8192]{0}', space=vmem, size = 0x2000, scoped, tag = 'input window, operand 5, single buffered']
    #allocation8 [shape = 'u8[8192]{0}', space=vmem, size = 0x2000, scoped, tag = 'input window, operand 7, single buffered']
    #allocation9 [shape = 's32[1]{0}', space=sflag, size = 0x4, scoped, tag = 'scoped memory for tpu_custom_call.1']
    %17 = vsyncpa [#allocation4], 0
    %18 = vsyncpa [#allocation6], 0
    %19 = vsyncpa [#allocation9], 0
    // Predicated region
    $region2: #{tpu_custom_call.1} parent=1 // pred_check
      _
    $region3: #{tpu_custom_call.1} parent=1 // pred_check_branch
      %21 = sbr.rel (0) target = $region5
    $region4: #{tpu_custom_call.1} parent=1 // pred_region
      _
    $region5: #{tpu_custom_call.1} parent=1 // pred_fallthru
      _
    // Predicated region
    $region6: #{tpu_custom_call.1} parent=1 // pred_check
      _
    $region7: #{tpu_custom_call.1} parent=1 // pred_check_branch
      %23 = sbr.rel (0) target = $region9
    $region8: #{tpu_custom_call.1} parent=1 // pred_region
      %s25 = ssub.s32 256, 256
      %26 = vsyncadd [#allocation4], %s25
      %s27 = sshll.u32 [#allocation3], 4
      %s28 = int_to_ptr.vmem [resolvable:$true] %s27
      %33 = dma.hbm_to_vmem [thread:$0]  %s1, 256, %s28, [#allocation4], 128, 128, 8
    $region9: #{tpu_custom_call.1} parent=1 // pred_fallthru
      _
    // Predicated region
    $region10: #{tpu_custom_call.1} parent=1 // pred_check
      _
    $region11: #{tpu_custom_call.1} parent=1 // pred_check_branch
      %35 = sbr.rel (0) target = $region13
    $region12: #{tpu_custom_call.1} parent=1 // pred_region
      %s37 = ssub.s32 16, 16
      %38 = vsyncadd [#allocation6], %s37
      %s40 = sshll.u32 [#allocation5], 4
      %s41 = int_to_ptr.vmem [resolvable:$true] %s40
      %43 = dma.hbm_to_vmem [thread:$0]  %s2, 16, %s41, [#allocation6]
    $region13: #{tpu_custom_call.1} parent=1 // pred_fallthru
      _
    // Predicated region
    $region14: #{tpu_custom_call.1} parent=1 // pred_check
      _
    $region15: #{tpu_custom_call.1} parent=1 // pred_check_branch
      %45 = sbr.rel (0) target = $region17
    $region16: #{tpu_custom_call.1} parent=1 // pred_region
      _
    $region17: #{tpu_custom_call.1} parent=1 // pred_fallthru
      _
    // Predicated region
    $region18: #{tpu_custom_call.1} parent=1 // pred_check
      _
    $region19: #{tpu_custom_call.1} parent=1 // pred_check_branch
      %47 = sbr.rel (0) target = $region21
    $region20: #{tpu_custom_call.1} parent=1 // pred_region
      _
    $region21: #{tpu_custom_call.1} parent=1 // pred_fallthru
      _
    // Predicated region
    $region22: #{tpu_custom_call.1} parent=1 // pred_check
      _
    $region23: #{tpu_custom_call.1} parent=1 // pred_check_branch
      %49 = sbr.rel (0) target = $region25
    $region24: #{tpu_custom_call.1} parent=1 // pred_region
      %s51 = ssub.s32 256, 256
      %52 = vsyncadd [#allocation6], %s51
      %s53 = sshll.u32 [#allocation7], 4
      %s54 = int_to_ptr.vmem [resolvable:$true] %s53
      %59 = dma.hbm_to_vmem [thread:$0]  %s5, 256, %s54, [#allocation6], 128, 128, 8
    $region25: #{tpu_custom_call.1} parent=1 // pred_fallthru
      _
    // Predicated region
    $region26: #{tpu_custom_call.1} parent=1 // pred_check
      _
    $region27: #{tpu_custom_call.1} parent=1 // pred_check_branch
      %61 = sbr.rel (0) target = $region29
    $region28: #{tpu_custom_call.1} parent=1 // pred_region
      _
    $region29: #{tpu_custom_call.1} parent=1 // pred_fallthru
      _
    // Predicated region
    $region30: #{tpu_custom_call.1} parent=1 // pred_check
      _
    $region31: #{tpu_custom_call.1} parent=1 // pred_check_branch
      %63 = sbr.rel (0) target = $region33
    $region32: #{tpu_custom_call.1} parent=1 // pred_region
      %s65 = ssub.s32 256, 256
      %66 = vsyncadd [#allocation9], %s65
      %s67 = sshll.u32 [#allocation8], 4
      %s68 = int_to_ptr.vmem [resolvable:$true] %s67
      %73 = dma.hbm_to_vmem [thread:$0]  %s7, 256, %s68, [#allocation9], 128, 128, 8
    $region33: #{tpu_custom_call.1} parent=1 // pred_fallthru
      _
    // Predicated region
    $region34: #{tpu_custom_call.1} parent=1 // pred_check
      _
    $region35: #{tpu_custom_call.1} parent=1 // pred_check_branch
      %75 = sbr.rel (0) target = $region37
    $region36: #{tpu_custom_call.1} parent=1 // pred_region
      _
    $region37: #{tpu_custom_call.1} parent=1 // pred_fallthru
      _
    // Predicated region
    $region38: #{tpu_custom_call.1} parent=1 // pred_check
      _
    $region39: #{tpu_custom_call.1} parent=1 // pred_check_branch
      %77 = sbr.rel (0) target = $region41
    $region40: #{tpu_custom_call.1} parent=1 // pred_region
      _
    $region41: #{tpu_custom_call.1} parent=1 // pred_fallthru
      _
    // Predicated region
    $region42: #{tpu_custom_call.1} parent=1 // pred_check
      _
    $region43: #{tpu_custom_call.1} parent=1 // pred_check_branch
      %79 = sbr.rel (0) target = $region45
    $region44: #{tpu_custom_call.1} parent=1 // pred_region
      %80 = dma.done [#allocation4], 256
    $region45: #{tpu_custom_call.1} parent=1 // pred_fallthru
      _
    // Predicated region
    $region46: #{tpu_custom_call.1} parent=1 // pred_check
      _
    $region47: #{tpu_custom_call.1} parent=1 // pred_check_branch
      %82 = sbr.rel (0) target = $region49
    $region48: #{tpu_custom_call.1} parent=1 // pred_region
      %83 = dma.done [#allocation6], 16
    $region49: #{tpu_custom_call.1} parent=1 // pred_fallthru
      _
    // Predicated region
    $region50: #{tpu_custom_call.1} parent=1 // pred_check
      _
    $region51: #{tpu_custom_call.1} parent=1 // pred_check_branch
      %85 = sbr.rel (0) target = $region53
    $region52: #{tpu_custom_call.1} parent=1 // pred_region
      %86 = dma.done [#allocation6], 256
    $region53: #{tpu_custom_call.1} parent=1 // pred_fallthru
      _
    // Predicated region
    $region54: #{tpu_custom_call.1} parent=1 // pred_check
      _
    $region55: #{tpu_custom_call.1} parent=1 // pred_check_branch
      %88 = sbr.rel (0) target = $region57
    $region56: #{tpu_custom_call.1} parent=1 // pred_region
      %89 = dma.done [#allocation9], 256
    $region57: #{tpu_custom_call.1} parent=1 // pred_fallthru
      _
    %v90 = vld [vmem:[%s0] sm:$0x3]
    %v91 = vld [vmem:[%s0 + $0x2] sm:$0x3]
    %v92 = vld [vmem:[%s0 + $0x4] sm:$0x3]
    %v93 = vld [vmem:[%s0 + $0x6] sm:$0x3]
    %v94 = vld [vmem:[%s0 + $0x8] sm:$0x3]
    %v95 = vld [vmem:[%s0 + $0xa] sm:$0x3]
    %v96 = vld [vmem:[%s0 + $0xc] sm:$0x3]
    %v97 = vld [vmem:[%s0 + $0xe] sm:$0x3]
    %v98 = vld [vmem:[#allocation3] sm:$0xff]
    %v99 = vld [vmem:[#allocation3 + $0x8] sm:$0x3]
    %v100 = vld [vmem:[#allocation5] sm:$0x1]
    %v102 = vlaneseq
    %v103 = vshrl.u32 %v102, 7
    %v104 = vsub.s32 0, %v103
    %v105 = vrot.slane %v100, %v104
    %v115 = vcombine.low %v90, %v91
    %v116 = vcombine.low %v92, %v93
    %v118 = vunpack.c.l.s4 1983009808
    %v119 = vunpack.c.0.s8 %v118
    %v120 = vlaneseq
    %v121 = vshrl.u32 %v120, 7
    %v122 = vsub.s32 %v119, %v121
    %v123 = vrot.slane %v115, %v122
    %v125 = vunpack.c.l.s4 1983009808
    %v126 = vunpack.c.0.s8 %v125
    %v127 = vlaneseq
    %v128 = vshrl.u32 %v127, 7
    %v129 = vsub.s32 %v126, %v128
    %v130 = vrot.slane %v116, %v129
    %v131 = vcombine.low %v123, %v130
    %v132 = vcombine.low %v94, %v95
    %v133 = vcombine.low %v96, %v97
    %v135 = vunpack.c.l.s4 1983009808
    %v136 = vunpack.c.0.s8 %v135
    %v137 = vlaneseq
    %v138 = vshrl.u32 %v137, 7
    %v139 = vsub.s32 %v136, %v138
    %v140 = vrot.slane %v132, %v139
    %v142 = vunpack.c.l.s4 1983009808
    %v143 = vunpack.c.0.s8 %v142
    %v144 = vlaneseq
    %v145 = vshrl.u32 %v144, 7
    %v146 = vsub.s32 %v143, %v145
    %v147 = vrot.slane %v133, %v146
    %v148 = vcombine.low %v140, %v147
    %vm149 = vcmask 80896
    %v150 = vsel %vm149, %v131, 0
    %v152 = vsel %vm149, %v148, 0
    %vm154 = vcmask 1041408
    %v156 = vsel %vm154, %v99, 0
    %158 = vmatprep.subr.mxu0 0.0
    %159 = vmatpush1.msra.mxu0 %v98
    %160 = vmatprep.subr.mxu0 0.0
    %161 = vmatpush1.msra.mxu0 %v156
    %162 = vmatprep.subr.mxu0 0.0
    %163 = vmatpush1.msra.mxu0 0.0
    %164 = vmatprep.subr.mxu0 0.0
    %165 = vmatpush1.msra.mxu0 0.0
    %166 = vmatprep.subr.mxu0 0.0
    %167 = vmatpush1.msra.mxu0 0.0
    %168 = vmatprep.subr.mxu0 0.0
    %169 = vmatpush1.msra.mxu0 0.0
    %170 = vmatprep.subr.mxu0 0.0
    %171 = vmatpush1.msra.mxu0 0.0
    %172 = vmatprep.subr.mxu0 0.0
    %173 = vmatpush1.msra.mxu0 0.0
    %174 = vmatprep.subr.mxu0 0.0
    %175 = vmatpush1.msra.mxu0 0.0
    %176 = vmatprep.subr.mxu0 0.0
    %177 = vmatpush1.msra.mxu0 0.0
    %178 = vmatprep.subr.mxu0 0.0
    %179 = vmatpush1.msra.mxu0 0.0
    %180 = vmatprep.subr.mxu0 0.0
    %181 = vmatpush1.msra.mxu0 0.0
    %182 = vmatprep.subr.mxu0 0.0
    %183 = vmatpush1.msra.mxu0 0.0
    %184 = vmatprep.subr.mxu0 0.0
    %185 = vmatpush1.msra.mxu0 0.0
    %186 = vmatprep.subr.mxu0 0.0
    %187 = vmatpush1.msra.mxu0 0.0
    %188 = vmatprep.subr.mxu0 0.0
    %189 = vmatpush1.msra.mxu0 0.0
    %190 = vmatprep.subr.mxu0 0.0
    %191 = vmatpush1.msra.mxu0 0.0
    %192 = vmatprep.subr.mxu0 0.0
    %193 = vmatpush1.msra.mxu0 0.0
    %194 = vmatprep.subr.mxu0 0.0
    %195 = vmatpush1.msra.mxu0 0.0
    %196 = vmatprep.subr.mxu0 0.0
    %197 = vmatpush1.msra.mxu0 0.0
    %198 = vmatprep.subr.mxu0 0.0
    %199 = vmatpush1.msra.mxu0 0.0
    %200 = vmatprep.subr.mxu0 0.0
    %201 = vmatpush1.msra.mxu0 0.0
    %202 = vmatprep.subr.mxu0 0.0
    %203 = vmatpush1.msra.mxu0 0.0
    %204 = vmatprep.subr.mxu0 0.0
    %205 = vmatpush1.msra.mxu0 0.0
    %206 = vmatprep.subr.mxu0 0.0
    %207 = vmatpush1.msra.mxu0 0.0
    %208 = vmatprep.subr.mxu0 0.0
    %209 = vmatpush1.msra.mxu0 0.0
    %210 = vmatprep.subr.mxu0 0.0
    %211 = vmatpush1.msra.mxu0 0.0
    %212 = vmatprep.subr.mxu0 0.0
    %213 = vmatpush1.msra.mxu0 0.0
    %214 = vmatprep.subr.mxu0 0.0
    %215 = vmatpush1.msra.mxu0 0.0
    %216 = vmatprep.subr.mxu0 0.0
    %217 = vmatpush1.msra.mxu0 0.0
    %218 = vmatprep.subr.mxu0 0.0
    %219 = vmatpush1.msra.mxu0 0.0
    %220 = vmatprep.subr.mxu0 0.0
    %221 = vmatpush1.msra.mxu0 0.0
    %222 = vmatprep.mubr.f32.mxu0 0.0
    %223 = vmatmul.mubr.f32.gmra.mrb[0].mxu0 %v150
    %v224 = vpop.f32.mrb[0].mxu0
    %v225 = vadd.f32 %v105, %v224
    %v226 = vpop.f32.mrb[0].mxu0
    %227 = vmatprep.mubr.f32.mxu0 0.0
    %228 = vmatmul.mubr.f32.gmra.mrb[0].mxu0 %v152
    %v229 = vpop.f32.mrb[0].mxu0
    %v230 = vadd.f32 %v105, %v229
    %v231 = vpop.f32.mrb[0].mxu0
    %232 = vdwg.mxu0
    %v233 = vld [vmem:[%s3] sm:$0xff]
    %v234 = vld [vmem:[%s3 + $0x8] sm:$0xff]
    %v235 = vld [vmem:[%s4] sm:$0x1]
    %v237 = vlaneseq
    %v238 = vshrl.u32 %v237, 7
    %v239 = vsub.s32 0, %v238
    %v240 = vrot.slane %v235, %v239
    %vm242 = vcmask 130048
    %v244 = vsel %vm242, 0.0, 0
    %246 = vmatprep.subr.mxu0 0.0
    %247 = vmatpush1.msra.mxu0 %v233
    %248 = vmatprep.subr.mxu0 0.0
    %249 = vmatpush1.msra.mxu0 %v234
    %250 = vmatprep.subr.mxu0 0.0
    %251 = vmatpush1.msra.mxu0 0.0
    %252 = vmatprep.subr.mxu0 0.0
    %253 = vmatpush1.msra.mxu0 0.0
    %254 = vmatprep.subr.mxu0 0.0
    %255 = vmatpush1.msra.mxu0 0.0
    %256 = vmatprep.subr.mxu0 0.0
    %257 = vmatpush1.msra.mxu0 0.0
    %258 = vmatprep.subr.mxu0 0.0
    %259 = vmatpush1.msra.mxu0 0.0
    %260 = vmatprep.subr.mxu0 0.0
    %261 = vmatpush1.msra.mxu0 0.0
    %262 = vmatprep.subr.mxu0 0.0
    %263 = vmatpush1.msra.mxu0 0.0
    %264 = vmatprep.subr.mxu0 0.0
    %265 = vmatpush1.msra.mxu0 0.0
    %266 = vmatprep.subr.mxu0 0.0
    %267 = vmatpush1.msra.mxu0 0.0
    %268 = vmatprep.subr.mxu0 0.0
    %269 = vmatpush1.msra.mxu0 0.0
    %270 = vmatprep.subr.mxu0 0.0
    %271 = vmatpush1.msra.mxu0 0.0
    %272 = vmatprep.subr.mxu0 0.0
    %273 = vmatpush1.msra.mxu0 0.0
    %274 = vmatprep.subr.mxu0 0.0
    %275 = vmatpush1.msra.mxu0 0.0
    %276 = vmatprep.subr.mxu0 0.0
    %277 = vmatpush1.msra.mxu0 0.0
    %278 = vmatprep.subr.mxu0 0.0
    %279 = vmatpush1.msra.mxu0 0.0
    %280 = vmatprep.subr.mxu0 0.0
    %281 = vmatpush1.msra.mxu0 0.0
    %282 = vmatprep.subr.mxu0 0.0
    %283 = vmatpush1.msra.mxu0 0.0
    %284 = vmatprep.subr.mxu0 0.0
    %285 = vmatpush1.msra.mxu0 0.0
    %286 = vmatprep.subr.mxu0 0.0
    %287 = vmatpush1.msra.mxu0 0.0
    %288 = vmatprep.subr.mxu0 0.0
    %289 = vmatpush1.msra.mxu0 0.0
    %290 = vmatprep.subr.mxu0 0.0
    %291 = vmatpush1.msra.mxu0 0.0
    %292 = vmatprep.subr.mxu0 0.0
    %293 = vmatpush1.msra.mxu0 0.0
    %294 = vmatprep.subr.mxu0 0.0
    %295 = vmatpush1.msra.mxu0 0.0
    %296 = vmatprep.subr.mxu0 0.0
    %297 = vmatpush1.msra.mxu0 0.0
    %298 = vmatprep.subr.mxu0 0.0
    %299 = vmatpush1.msra.mxu0 0.0
    %300 = vmatprep.subr.mxu0 0.0
    %301 = vmatpush1.msra.mxu0 0.0
    %302 = vmatprep.subr.mxu0 0.0
    %303 = vmatpush1.msra.mxu0 0.0
    %304 = vmatprep.subr.mxu0 0.0
    %305 = vmatpush1.msra.mxu0 0.0
    %306 = vmatprep.subr.mxu0 0.0
    %307 = vmatpush1.msra.mxu0 0.0
    %308 = vmatprep.subr.mxu0 0.0
    %309 = vmatpush1.msra.mxu0 0.0
    %310 = vmatprep.mubr.f32.mxu0 0.0
    %311 = vmatmul.mubr.f32.gmra.mrb[0].mxu0 %v244
    %v312 = vpop.f32.mrb[0].mxu0
    %v313 = vadd.f32 %v240, %v312
    %v314 = vpop.f32.mrb[0].mxu0
    %315 = vdwg.mxu0
    %v316 = vadd.f32 %v225, %v313
    %v317 = vxor.u32 %v316, 2147483648
    %v318 = vmul.f32 %v317, 1.442695
    %v319 = vpow.pop %v318
    %v320 = vadd.f32 %v319, 1.0
    %v321 = vrcp.pop %v320
    %v322 = vmul.f32 1.0, %v321
    %324 = vrot.lane.b32.xlu0 %v313, 96
    %v325 = vpop.permute.xlu0 %324
    %v327 = vmul.f32 %v322, %v325
    %329 = vrot.lane.b32.xlu0 %v327, 32
    %v330 = vpop.permute.xlu0 %329
    %v332 = vadd.f32 %v225, %v330
    %v333 = vtanh.pop %v332
    %v334 = vsub.f32 1.0, %v322
    %336 = vrot.lane.b32.xlu0 %v333, 112
    %v337 = vpop.permute.xlu0 %336
    %v339 = vmul.f32 %v334, %v337
    %v340 = vmul.f32 %v322, 0.0
    %v341 = vadd.f32 %v339, %v340
    %343 = vrot.lane.b32.xlu0 %v341, 112
    %v344 = vpop.permute.xlu0 %343
    %v345 = vsel %vm242, %v344, 0
    %347 = vmatprep.subr.mxu0 0.0
    %348 = vmatpush1.msra.mxu0 %v233
    %349 = vmatprep.subr.mxu0 0.0
    %350 = vmatpush1.msra.mxu0 %v234
    %351 = vmatprep.subr.mxu0 0.0
    %352 = vmatpush1.msra.mxu0 0.0
    %353 = vmatprep.subr.mxu0 0.0
    %354 = vmatpush1.msra.mxu0 0.0
    %355 = vmatprep.subr.mxu0 0.0
    %356 = vmatpush1.msra.mxu0 0.0
    %357 = vmatprep.subr.mxu0 0.0
    %358 = vmatpush1.msra.mxu0 0.0
    %359 = vmatprep.subr.mxu0 0.0
    %360 = vmatpush1.msra.mxu0 0.0
    %361 = vmatprep.subr.mxu0 0.0
    %362 = vmatpush1.msra.mxu0 0.0
    %363 = vmatprep.subr.mxu0 0.0
    %364 = vmatpush1.msra.mxu0 0.0
    %365 = vmatprep.subr.mxu0 0.0
    %366 = vmatpush1.msra.mxu0 0.0
    %367 = vmatprep.subr.mxu0 0.0
    %368 = vmatpush1.msra.mxu0 0.0
    %369 = vmatprep.subr.mxu0 0.0
    %370 = vmatpush1.msra.mxu0 0.0
    %371 = vmatprep.subr.mxu0 0.0
    %372 = vmatpush1.msra.mxu0 0.0
    %373 = vmatprep.subr.mxu0 0.0
    %374 = vmatpush1.msra.mxu0 0.0
    %375 = vmatprep.subr.mxu0 0.0
    %376 = vmatpush1.msra.mxu0 0.0
    %377 = vmatprep.subr.mxu0 0.0
    %378 = vmatpush1.msra.mxu0 0.0
    %379 = vmatprep.subr.mxu0 0.0
    %380 = vmatpush1.msra.mxu0 0.0
    %381 = vmatprep.subr.mxu0 0.0
    %382 = vmatpush1.msra.mxu0 0.0
    %383 = vmatprep.subr.mxu0 0.0
    %384 = vmatpush1.msra.mxu0 0.0
    %385 = vmatprep.subr.mxu0 0.0
    %386 = vmatpush1.msra.mxu0 0.0
    %387 = vmatprep.subr.mxu0 0.0
    %388 = vmatpush1.msra.mxu0 0.0
    %389 = vmatprep.subr.mxu0 0.0
    %390 = vmatpush1.msra.mxu0 0.0
    %391 = vmatprep.subr.mxu0 0.0
    %392 = vmatpush1.msra.mxu0 0.0
    %393 = vmatprep.subr.mxu0 0.0
    %394 = vmatpush1.msra.mxu0 0.0
    %395 = vmatprep.subr.mxu0 0.0
    %396 = vmatpush1.msra.mxu0 0.0
    %397 = vmatprep.subr.mxu0 0.0
    %398 = vmatpush1.msra.mxu0 0.0
    %399 = vmatprep.subr.mxu0 0.0
    %400 = vmatpush1.msra.mxu0 0.0
    %401 = vmatprep.subr.mxu0 0.0
    %402 = vmatpush1.msra.mxu0 0.0
    %403 = vmatprep.subr.mxu0 0.0
    %404 = vmatpush1.msra.mxu0 0.0
    %405 = vmatprep.subr.mxu0 0.0
    %406 = vmatpush1.msra.mxu0 0.0
    %407 = vmatprep.subr.mxu0 0.0
    %408 = vmatpush1.msra.mxu0 0.0
    %409 = vmatprep.subr.mxu0 0.0
    %410 = vmatpush1.msra.mxu0 0.0
    %411 = vmatprep.mubr.f32.mxu0 0.0
    %412 = vmatmul.mubr.f32.gmra.mrb[0].mxu0 %v345
    %v413 = vpop.f32.mrb[0].mxu0
    %v414 = vadd.f32 %v240, %v413
    %v415 = vpop.f32.mrb[0].mxu0
    %416 = vdwg.mxu0
    %v418 = vrot.slane %v414, 6
    %v420 = vadd.f32 %v225, %v418
    %v421 = vxor.u32 %v420, 2147483648
    %v422 = vmul.f32 %v421, 1.442695
    %v423 = vpow.pop %v422
    %v424 = vadd.f32 %v423, 1.0
    %v425 = vrcp.pop %v424
    %v426 = vmul.f32 1.0, %v425
    %427 = vrot.lane.b32.xlu0 %v418, 96
    %v428 = vpop.permute.xlu0 %427
    %v430 = vmul.f32 %v426, %v428
    %432 = vrot.lane.b32.xlu0 %v430, 32
    %v433 = vpop.permute.xlu0 %432
    %v435 = vadd.f32 %v225, %v433
    %v436 = vtanh.pop %v435
    %v437 = vsub.f32 1.0, %v426
    %439 = vrot.lane.b32.xlu0 %v436, 112
    %v440 = vpop.permute.xlu0 %439
    %v442 = vmul.f32 %v437, %v440
    %v443 = vrot.slane %v341, 6
    %v445 = vmul.f32 %v426, %v443
    %v446 = vadd.f32 %v442, %v445
    %v448 = vrot.slane %v446, 2
    %449 = vrot.lane.b32.xlu0 %v448, 112
    %v450 = vpop.permute.xlu0 %449
    %v451 = vsel %vm242, %v450, 0
    %453 = vmatprep.subr.mxu0 0.0
    %454 = vmatpush1.msra.mxu0 %v233
    %455 = vmatprep.subr.mxu0 0.0
    %456 = vmatpush1.msra.mxu0 %v234
    %457 = vmatprep.subr.mxu0 0.0
    %458 = vmatpush1.msra.mxu0 0.0
    %459 = vmatprep.subr.mxu0 0.0
    %460 = vmatpush1.msra.mxu0 0.0
    %461 = vmatprep.subr.mxu0 0.0
    %462 = vmatpush1.msra.mxu0 0.0
    %463 = vmatprep.subr.mxu0 0.0
    %464 = vmatpush1.msra.mxu0 0.0
    %465 = vmatprep.subr.mxu0 0.0
    %466 = vmatpush1.msra.mxu0 0.0
    %467 = vmatprep.subr.mxu0 0.0
    %468 = vmatpush1.msra.mxu0 0.0
    %469 = vmatprep.subr.mxu0 0.0
    %470 = vmatpush1.msra.mxu0 0.0
    %471 = vmatprep.subr.mxu0 0.0
    %472 = vmatpush1.msra.mxu0 0.0
    %473 = vmatprep.subr.mxu0 0.0
    %474 = vmatpush1.msra.mxu0 0.0
    %475 = vmatprep.subr.mxu0 0.0
    %476 = vmatpush1.msra.mxu0 0.0
    %477 = vmatprep.subr.mxu0 0.0
    %478 = vmatpush1.msra.mxu0 0.0
    %479 = vmatprep.subr.mxu0 0.0
    %480 = vmatpush1.msra.mxu0 0.0
    %481 = vmatprep.subr.mxu0 0.0
    %482 = vmatpush1.msra.mxu0 0.0
    %483 = vmatprep.subr.mxu0 0.0
    %484 = vmatpush1.msra.mxu0 0.0
    %485 = vmatprep.subr.mxu0 0.0
    %486 = vmatpush1.msra.mxu0 0.0
    %487 = vmatprep.subr.mxu0 0.0
    %488 = vmatpush1.msra.mxu0 0.0
    %489 = vmatprep.subr.mxu0 0.0
    %490 = vmatpush1.msra.mxu0 0.0
    %491 = vmatprep.subr.mxu0 0.0
    %492 = vmatpush1.msra.mxu0 0.0
    %493 = vmatprep.subr.mxu0 0.0
    %494 = vmatpush1.msra.mxu0 0.0
    %495 = vmatprep.subr.mxu0 0.0
    %496 = vmatpush1.msra.mxu0 0.0
    %497 = vmatprep.subr.mxu0 0.0
    %498 = vmatpush1.msra.mxu0 0.0
    %499 = vmatprep.subr.mxu0 0.0
    %500 = vmatpush1.msra.mxu0 0.0
    %501 = vmatprep.subr.mxu0 0.0
    %502 = vmatpush1.msra.mxu0 0.0
    %503 = vmatprep.subr.mxu0 0.0
    %504 = vmatpush1.msra.mxu0 0.0
    %505 = vmatprep.subr.mxu0 0.0
    %506 = vmatpush1.msra.mxu0 0.0
    %507 = vmatprep.subr.mxu0 0.0
    %508 = vmatpush1.msra.mxu0 0.0
    %509 = vmatprep.subr.mxu0 0.0
    %510 = vmatpush1.msra.mxu0 0.0
    %511 = vmatprep.subr.mxu0 0.0
    %512 = vmatpush1.msra.mxu0 0.0
    %513 = vmatprep.subr.mxu0 0.0
    %514 = vmatpush1.msra.mxu0 0.0
    %515 = vmatprep.subr.mxu0 0.0
    %516 = vmatpush1.msra.mxu0 0.0
    %517 = vmatprep.mubr.f32.mxu0 0.0
    %518 = vmatmul.mubr.f32.gmra.mrb[0].mxu0 %v451
    %v519 = vpop.f32.mrb[0].mxu0
    %v520 = vadd.f32 %v240, %v519
    %v521 = vpop.f32.mrb[0].mxu0
    %522 = vdwg.mxu0
    %v524 = vrot.slane %v520, 4
    %v526 = vadd.f32 %v225, %v524
    %v527 = vxor.u32 %v526, 2147483648
    %v528 = vmul.f32 %v527, 1.442695
    %v529 = vpow.pop %v528
    %v530 = vadd.f32 %v529, 1.0
    %v531 = vrcp.pop %v530
    %v532 = vmul.f32 1.0, %v531
    %533 = vrot.lane.b32.xlu0 %v524, 96
    %v534 = vpop.permute.xlu0 %533
    %v536 = vmul.f32 %v532, %v534
    %538 = vrot.lane.b32.xlu0 %v536, 32
    %v539 = vpop.permute.xlu0 %538
    %v541 = vadd.f32 %v225, %v539
    %v542 = vtanh.pop %v541
    %v543 = vsub.f32 1.0, %v532
    %545 = vrot.lane.b32.xlu0 %v542, 112
    %v546 = vpop.permute.xlu0 %545
    %v548 = vmul.f32 %v543, %v546
    %v549 = vrot.slane %v446, 6
    %v551 = vmul.f32 %v532, %v549
    %v552 = vadd.f32 %v548, %v551
    %v554 = vrot.slane %v552, 4
    %555 = vrot.lane.b32.xlu0 %v554, 112
    %v556 = vpop.permute.xlu0 %555
    %v557 = vsel %vm242, %v556, 0
    %559 = vmatprep.subr.mxu0 0.0
    %560 = vmatpush1.msra.mxu0 %v233
    %561 = vmatprep.subr.mxu0 0.0
    %562 = vmatpush1.msra.mxu0 %v234
    %563 = vmatprep.subr.mxu0 0.0
    %564 = vmatpush1.msra.mxu0 0.0
    %565 = vmatprep.subr.mxu0 0.0
    %566 = vmatpush1.msra.mxu0 0.0
    %567 = vmatprep.subr.mxu0 0.0
    %568 = vmatpush1.msra.mxu0 0.0
    %569 = vmatprep.subr.mxu0 0.0
    %570 = vmatpush1.msra.mxu0 0.0
    %571 = vmatprep.subr.mxu0 0.0
    %572 = vmatpush1.msra.mxu0 0.0
    %573 = vmatprep.subr.mxu0 0.0
    %574 = vmatpush1.msra.mxu0 0.0
    %575 = vmatprep.subr.mxu0 0.0
    %576 = vmatpush1.msra.mxu0 0.0
    %577 = vmatprep.subr.mxu0 0.0
    %578 = vmatpush1.msra.mxu0 0.0
    %579 = vmatprep.subr.mxu0 0.0
    %580 = vmatpush1.msra.mxu0 0.0
    %581 = vmatprep.subr.mxu0 0.0
    %582 = vmatpush1.msra.mxu0 0.0
    %583 = vmatprep.subr.mxu0 0.0
    %584 = vmatpush1.msra.mxu0 0.0
    %585 = vmatprep.subr.mxu0 0.0
    %586 = vmatpush1.msra.mxu0 0.0
    %587 = vmatprep.subr.mxu0 0.0
    %588 = vmatpush1.msra.mxu0 0.0
    %589 = vmatprep.subr.mxu0 0.0
    %590 = vmatpush1.msra.mxu0 0.0
    %591 = vmatprep.subr.mxu0 0.0
    %592 = vmatpush1.msra.mxu0 0.0
    %593 = vmatprep.subr.mxu0 0.0
    %594 = vmatpush1.msra.mxu0 0.0
    %595 = vmatprep.subr.mxu0 0.0
    %596 = vmatpush1.msra.mxu0 0.0
    %597 = vmatprep.subr.mxu0 0.0
    %598 = vmatpush1.msra.mxu0 0.0
    %599 = vmatprep.subr.mxu0 0.0
    %600 = vmatpush1.msra.mxu0 0.0
    %601 = vmatprep.subr.mxu0 0.0
    %602 = vmatpush1.msra.mxu0 0.0
    %603 = vmatprep.subr.mxu0 0.0
    %604 = vmatpush1.msra.mxu0 0.0
    %605 = vmatprep.subr.mxu0 0.0
    %606 = vmatpush1.msra.mxu0 0.0
    %607 = vmatprep.subr.mxu0 0.0
    %608 = vmatpush1.msra.mxu0 0.0
    %609 = vmatprep.subr.mxu0 0.0
    %610 = vmatpush1.msra.mxu0 0.0
    %611 = vmatprep.subr.mxu0 0.0
    %612 = vmatpush1.msra.mxu0 0.0
    %613 = vmatprep.subr.mxu0 0.0
    %614 = vmatpush1.msra.mxu0 0.0
    %615 = vmatprep.subr.mxu0 0.0
    %616 = vmatpush1.msra.mxu0 0.0
    %617 = vmatprep.subr.mxu0 0.0
    %618 = vmatpush1.msra.mxu0 0.0
    %619 = vmatprep.subr.mxu0 0.0
    %620 = vmatpush1.msra.mxu0 0.0
    %621 = vmatprep.subr.mxu0 0.0
    %622 = vmatpush1.msra.mxu0 0.0
    %623 = vmatprep.mubr.f32.mxu0 0.0
    %624 = vmatmul.mubr.f32.gmra.mrb[0].mxu0 %v557
    %v625 = vpop.f32.mrb[0].mxu0
    %v626 = vadd.f32 %v240, %v625
    %v627 = vpop.f32.mrb[0].mxu0
    %628 = vdwg.mxu0
    %v630 = vrot.slane %v626, 2
    %v632 = vadd.f32 %v225, %v630
    %v633 = vxor.u32 %v632, 2147483648
    %v634 = vmul.f32 %v633, 1.442695
    %v635 = vpow.pop %v634
    %v636 = vadd.f32 %v635, 1.0
    %v637 = vrcp.pop %v636
    %v638 = vmul.f32 1.0, %v637
    %639 = vrot.lane.b32.xlu0 %v630, 96
    %v640 = vpop.permute.xlu0 %639
    %v642 = vmul.f32 %v638, %v640
    %644 = vrot.lane.b32.xlu0 %v642, 32
    %v645 = vpop.permute.xlu0 %644
    %v647 = vadd.f32 %v225, %v645
    %v648 = vtanh.pop %v647
    %v649 = vsub.f32 1.0, %v638
    %651 = vrot.lane.b32.xlu0 %v648, 112
    %v652 = vpop.permute.xlu0 %651
    %v654 = vmul.f32 %v649, %v652
    %v655 = vrot.slane %v552, 6
    %v657 = vmul.f32 %v638, %v655
    %v658 = vadd.f32 %v654, %v657
    %v660 = vrot.slane %v658, 6
    %661 = vrot.lane.b32.xlu0 %v660, 112
    %v662 = vpop.permute.xlu0 %661
    %v663 = vsel %vm242, %v662, 0
    %665 = vmatprep.subr.mxu0 0.0
    %666 = vmatpush1.msra.mxu0 %v233
    %667 = vmatprep.subr.mxu0 0.0
    %668 = vmatpush1.msra.mxu0 %v234
    %669 = vmatprep.subr.mxu0 0.0
    %670 = vmatpush1.msra.mxu0 0.0
    %671 = vmatprep.subr.mxu0 0.0
    %672 = vmatpush1.msra.mxu0 0.0
    %673 = vmatprep.subr.mxu0 0.0
    %674 = vmatpush1.msra.mxu0 0.0
    %675 = vmatprep.subr.mxu0 0.0
    %676 = vmatpush1.msra.mxu0 0.0
    %677 = vmatprep.subr.mxu0 0.0
    %678 = vmatpush1.msra.mxu0 0.0
    %679 = vmatprep.subr.mxu0 0.0
    %680 = vmatpush1.msra.mxu0 0.0
    %681 = vmatprep.subr.mxu0 0.0
    %682 = vmatpush1.msra.mxu0 0.0
    %683 = vmatprep.subr.mxu0 0.0
    %684 = vmatpush1.msra.mxu0 0.0
    %685 = vmatprep.subr.mxu0 0.0
    %686 = vmatpush1.msra.mxu0 0.0
    %687 = vmatprep.subr.mxu0 0.0
    %688 = vmatpush1.msra.mxu0 0.0
    %689 = vmatprep.subr.mxu0 0.0
    %690 = vmatpush1.msra.mxu0 0.0
    %691 = vmatprep.subr.mxu0 0.0
    %692 = vmatpush1.msra.mxu0 0.0
    %693 = vmatprep.subr.mxu0 0.0
    %694 = vmatpush1.msra.mxu0 0.0
    %695 = vmatprep.subr.mxu0 0.0
    %696 = vmatpush1.msra.mxu0 0.0
    %697 = vmatprep.subr.mxu0 0.0
    %698 = vmatpush1.msra.mxu0 0.0
    %699 = vmatprep.subr.mxu0 0.0
    %700 = vmatpush1.msra.mxu0 0.0
    %701 = vmatprep.subr.mxu0 0.0
    %702 = vmatpush1.msra.mxu0 0.0
    %703 = vmatprep.subr.mxu0 0.0
    %704 = vmatpush1.msra.mxu0 0.0
    %705 = vmatprep.subr.mxu0 0.0
    %706 = vmatpush1.msra.mxu0 0.0
    %707 = vmatprep.subr.mxu0 0.0
    %708 = vmatpush1.msra.mxu0 0.0
    %709 = vmatprep.subr.mxu0 0.0
    %710 = vmatpush1.msra.mxu0 0.0
    %711 = vmatprep.subr.mxu0 0.0
    %712 = vmatpush1.msra.mxu0 0.0
    %713 = vmatprep.subr.mxu0 0.0
    %714 = vmatpush1.msra.mxu0 0.0
    %715 = vmatprep.subr.mxu0 0.0
    %716 = vmatpush1.msra.mxu0 0.0
    %717 = vmatprep.subr.mxu0 0.0
    %718 = vmatpush1.msra.mxu0 0.0
    %719 = vmatprep.subr.mxu0 0.0
    %720 = vmatpush1.msra.mxu0 0.0
    %721 = vmatprep.subr.mxu0 0.0
    %722 = vmatpush1.msra.mxu0 0.0
    %723 = vmatprep.subr.mxu0 0.0
    %724 = vmatpush1.msra.mxu0 0.0
    %725 = vmatprep.subr.mxu0 0.0
    %726 = vmatpush1.msra.mxu0 0.0
    %727 = vmatprep.subr.mxu0 0.0
    %728 = vmatpush1.msra.mxu0 0.0
    %729 = vmatprep.mubr.f32.mxu0 0.0
    %730 = vmatmul.mubr.f32.gmra.mrb[0].mxu0 %v663
    %v731 = vpop.f32.mrb[0].mxu0
    %v732 = vadd.f32 %v240, %v731
    %v733 = vpop.f32.mrb[0].mxu0
    %734 = vdwg.mxu0
    %v735 = vadd.f32 %v230, %v732
    %v736 = vxor.u32 %v735, 2147483648
    %v737 = vmul.f32 %v736, 1.442695
    %v738 = vpow.pop %v737
    %v739 = vadd.f32 %v738, 1.0
    %v740 = vrcp.pop %v739
    %v741 = vmul.f32 1.0, %v740
    %743 = vrot.lane.b32.xlu0 %v732, 96
    %v744 = vpop.permute.xlu0 %743
    %v746 = vmul.f32 %v741, %v744
    %748 = vrot.lane.b32.xlu0 %v746, 32
    %v749 = vpop.permute.xlu0 %748
    %v751 = vadd.f32 %v230, %v749
    %v752 = vtanh.pop %v751
    %v753 = vsub.f32 1.0, %v741
    %755 = vrot.lane.b32.xlu0 %v752, 112
    %v756 = vpop.permute.xlu0 %755
    %v758 = vmul.f32 %v753, %v756
    %v760 = vmul.f32 %v741, %v660
    %v761 = vadd.f32 %v758, %v760
    %763 = vrot.lane.b32.xlu0 %v761, 112
    %v764 = vpop.permute.xlu0 %763
    %v765 = vsel %vm242, %v764, 0
    %767 = vmatprep.subr.mxu0 0.0
    %768 = vmatpush1.msra.mxu0 %v233
    %769 = vmatprep.subr.mxu0 0.0
    %770 = vmatpush1.msra.mxu0 %v234
    %771 = vmatprep.subr.mxu0 0.0
    %772 = vmatpush1.msra.mxu0 0.0
    %773 = vmatprep.subr.mxu0 0.0
    %774 = vmatpush1.msra.mxu0 0.0
    %775 = vmatprep.subr.mxu0 0.0
    %776 = vmatpush1.msra.mxu0 0.0
    %777 = vmatprep.subr.mxu0 0.0
    %778 = vmatpush1.msra.mxu0 0.0
    %779 = vmatprep.subr.mxu0 0.0
    %780 = vmatpush1.msra.mxu0 0.0
    %781 = vmatprep.subr.mxu0 0.0
    %782 = vmatpush1.msra.mxu0 0.0
    %783 = vmatprep.subr.mxu0 0.0
    %784 = vmatpush1.msra.mxu0 0.0
    %785 = vmatprep.subr.mxu0 0.0
    %786 = vmatpush1.msra.mxu0 0.0
    %787 = vmatprep.subr.mxu0 0.0
    %788 = vmatpush1.msra.mxu0 0.0
    %789 = vmatprep.subr.mxu0 0.0
    %790 = vmatpush1.msra.mxu0 0.0
    %791 = vmatprep.subr.mxu0 0.0
    %792 = vmatpush1.msra.mxu0 0.0
    %793 = vmatprep.subr.mxu0 0.0
    %794 = vmatpush1.msra.mxu0 0.0
    %795 = vmatprep.subr.mxu0 0.0
    %796 = vmatpush1.msra.mxu0 0.0
    %797 = vmatprep.subr.mxu0 0.0
    %798 = vmatpush1.msra.mxu0 0.0
    %799 = vmatprep.subr.mxu0 0.0
    %800 = vmatpush1.msra.mxu0 0.0
    %801 = vmatprep.subr.mxu0 0.0
    %802 = vmatpush1.msra.mxu0 0.0
    %803 = vmatprep.subr.mxu0 0.0
    %804 = vmatpush1.msra.mxu0 0.0
    %805 = vmatprep.subr.mxu0 0.0
    %806 = vmatpush1.msra.mxu0 0.0
    %807 = vmatprep.subr.mxu0 0.0
    %808 = vmatpush1.msra.mxu0 0.0
    %809 = vmatprep.subr.mxu0 0.0
    %810 = vmatpush1.msra.mxu0 0.0
    %811 = vmatprep.subr.mxu0 0.0
    %812 = vmatpush1.msra.mxu0 0.0
    %813 = vmatprep.subr.mxu0 0.0
    %814 = vmatpush1.msra.mxu0 0.0
    %815 = vmatprep.subr.mxu0 0.0
    %816 = vmatpush1.msra.mxu0 0.0
    %817 = vmatprep.subr.mxu0 0.0
    %818 = vmatpush1.msra.mxu0 0.0
    %819 = vmatprep.subr.mxu0 0.0
    %820 = vmatpush1.msra.mxu0 0.0
    %821 = vmatprep.subr.mxu0 0.0
    %822 = vmatpush1.msra.mxu0 0.0
    %823 = vmatprep.subr.mxu0 0.0
    %824 = vmatpush1.msra.mxu0 0.0
    %825 = vmatprep.subr.mxu0 0.0
    %826 = vmatpush1.msra.mxu0 0.0
    %827 = vmatprep.subr.mxu0 0.0
    %828 = vmatpush1.msra.mxu0 0.0
    %829 = vmatprep.subr.mxu0 0.0
    %830 = vmatpush1.msra.mxu0 0.0
    %831 = vmatprep.mubr.f32.mxu0 0.0
    %832 = vmatmul.mubr.f32.gmra.mrb[0].mxu0 %v765
    %v833 = vpop.f32.mrb[0].mxu0
    %v834 = vadd.f32 %v240, %v833
    %v835 = vpop.f32.mrb[0].mxu0
    %836 = vdwg.mxu0
    %v838 = vrot.slane %v834, 6
    %v840 = vadd.f32 %v230, %v838
    %v841 = vxor.u32 %v840, 2147483648
    %v842 = vmul.f32 %v841, 1.442695
    %v843 = vpow.pop %v842
    %v844 = vadd.f32 %v843, 1.0
    %v845 = vrcp.pop %v844
    %v846 = vmul.f32 1.0, %v845
    %847 = vrot.lane.b32.xlu0 %v838, 96
    %v848 = vpop.permute.xlu0 %847
    %v850 = vmul.f32 %v846, %v848
    %852 = vrot.lane.b32.xlu0 %v850, 32
    %v853 = vpop.permute.xlu0 %852
    %v855 = vadd.f32 %v230, %v853
    %v856 = vtanh.pop %v855
    %v857 = vsub.f32 1.0, %v846
    %859 = vrot.lane.b32.xlu0 %v856, 112
    %v860 = vpop.permute.xlu0 %859
    %v862 = vmul.f32 %v857, %v860
    %v863 = vrot.slane %v761, 6
    %v865 = vmul.f32 %v846, %v863
    %v866 = vadd.f32 %v862, %v865
    %v868 = vrot.slane %v866, 2
    %869 = vrot.lane.b32.xlu0 %v868, 112
    %v870 = vpop.permute.xlu0 %869
    %v871 = vsel %vm242, %v870, 0
    %873 = vmatprep.subr.mxu0 0.0
    %874 = vmatpush1.msra.mxu0 %v233
    %875 = vmatprep.subr.mxu0 0.0
    %876 = vmatpush1.msra.mxu0 %v234
    %877 = vmatprep.subr.mxu0 0.0
    %878 = vmatpush1.msra.mxu0 0.0
    %879 = vmatprep.subr.mxu0 0.0
    %880 = vmatpush1.msra.mxu0 0.0
    %881 = vmatprep.subr.mxu0 0.0
    %882 = vmatpush1.msra.mxu0 0.0
    %883 = vmatprep.subr.mxu0 0.0
    %884 = vmatpush1.msra.mxu0 0.0
    %885 = vmatprep.subr.mxu0 0.0
    %886 = vmatpush1.msra.mxu0 0.0
    %887 = vmatprep.subr.mxu0 0.0
    %888 = vmatpush1.msra.mxu0 0.0
    %889 = vmatprep.subr.mxu0 0.0
    %890 = vmatpush1.msra.mxu0 0.0
    %891 = vmatprep.subr.mxu0 0.0
    %892 = vmatpush1.msra.mxu0 0.0
    %893 = vmatprep.subr.mxu0 0.0
    %894 = vmatpush1.msra.mxu0 0.0
    %895 = vmatprep.subr.mxu0 0.0
    %896 = vmatpush1.msra.mxu0 0.0
    %897 = vmatprep.subr.mxu0 0.0
    %898 = vmatpush1.msra.mxu0 0.0
    %899 = vmatprep.subr.mxu0 0.0
    %900 = vmatpush1.msra.mxu0 0.0
    %901 = vmatprep.subr.mxu0 0.0
    %902 = vmatpush1.msra.mxu0 0.0
    %903 = vmatprep.subr.mxu0 0.0
    %904 = vmatpush1.msra.mxu0 0.0
    %905 = vmatprep.subr.mxu0 0.0
    %906 = vmatpush1.msra.mxu0 0.0
    %907 = vmatprep.subr.mxu0 0.0
    %908 = vmatpush1.msra.mxu0 0.0
    %909 = vmatprep.subr.mxu0 0.0
    %910 = vmatpush1.msra.mxu0 0.0
    %911 = vmatprep.subr.mxu0 0.0
    %912 = vmatpush1.msra.mxu0 0.0
    %913 = vmatprep.subr.mxu0 0.0
    %914 = vmatpush1.msra.mxu0 0.0
    %915 = vmatprep.subr.mxu0 0.0
    %916 = vmatpush1.msra.mxu0 0.0
    %917 = vmatprep.subr.mxu0 0.0
    %918 = vmatpush1.msra.mxu0 0.0
    %919 = vmatprep.subr.mxu0 0.0
    %920 = vmatpush1.msra.mxu0 0.0
    %921 = vmatprep.subr.mxu0 0.0
    %922 = vmatpush1.msra.mxu0 0.0
    %923 = vmatprep.subr.mxu0 0.0
    %924 = vmatpush1.msra.mxu0 0.0
    %925 = vmatprep.subr.mxu0 0.0
    %926 = vmatpush1.msra.mxu0 0.0
    %927 = vmatprep.subr.mxu0 0.0
    %928 = vmatpush1.msra.mxu0 0.0
    %929 = vmatprep.subr.mxu0 0.0
    %930 = vmatpush1.msra.mxu0 0.0
    %931 = vmatprep.subr.mxu0 0.0
    %932 = vmatpush1.msra.mxu0 0.0
    %933 = vmatprep.subr.mxu0 0.0
    %934 = vmatpush1.msra.mxu0 0.0
    %935 = vmatprep.subr.mxu0 0.0
    %936 = vmatpush1.msra.mxu0 0.0
    %937 = vmatprep.mubr.f32.mxu0 0.0
    %938 = vmatmul.mubr.f32.gmra.mrb[0].mxu0 %v871
    %v939 = vpop.f32.mrb[0].mxu0
    %v940 = vadd.f32 %v240, %v939
    %v941 = vpop.f32.mrb[0].mxu0
    %942 = vdwg.mxu0
    %v944 = vrot.slane %v940, 4
    %v946 = vadd.f32 %v230, %v944
    %v947 = vxor.u32 %v946, 2147483648
    %v948 = vmul.f32 %v947, 1.442695
    %v949 = vpow.pop %v948
    %v950 = vadd.f32 %v949, 1.0
    %v951 = vrcp.pop %v950
    %v952 = vmul.f32 1.0, %v951
    %953 = vrot.lane.b32.xlu0 %v944, 96
    %v954 = vpop.permute.xlu0 %953
    %v956 = vmul.f32 %v952, %v954
    %958 = vrot.lane.b32.xlu0 %v956, 32
    %v959 = vpop.permute.xlu0 %958
    %v961 = vadd.f32 %v230, %v959
    %v962 = vtanh.pop %v961
    %v963 = vsub.f32 1.0, %v952
    %965 = vrot.lane.b32.xlu0 %v962, 112
    %v966 = vpop.permute.xlu0 %965
    %v968 = vmul.f32 %v963, %v966
    %v969 = vrot.slane %v866, 6
    %v971 = vmul.f32 %v952, %v969
    %v972 = vadd.f32 %v968, %v971
    %v974 = vrot.slane %v972, 4
    %975 = vrot.lane.b32.xlu0 %v974, 112
    %v976 = vpop.permute.xlu0 %975
    %v977 = vsel %vm242, %v976, 0
    %979 = vmatprep.subr.mxu0 0.0
    %980 = vmatpush1.msra.mxu0 %v233
    %981 = vmatprep.subr.mxu0 0.0
    %982 = vmatpush1.msra.mxu0 %v234
    %983 = vmatprep.subr.mxu0 0.0
    %984 = vmatpush1.msra.mxu0 0.0
    %985 = vmatprep.subr.mxu0 0.0
    %986 = vmatpush1.msra.mxu0 0.0
    %987 = vmatprep.subr.mxu0 0.0
    %988 = vmatpush1.msra.mxu0 0.0
    %989 = vmatprep.subr.mxu0 0.0
    %990 = vmatpush1.msra.mxu0 0.0
    %991 = vmatprep.subr.mxu0 0.0
    %992 = vmatpush1.msra.mxu0 0.0
    %993 = vmatprep.subr.mxu0 0.0
    %994 = vmatpush1.msra.mxu0 0.0
    %995 = vmatprep.subr.mxu0 0.0
    %996 = vmatpush1.msra.mxu0 0.0
    %997 = vmatprep.subr.mxu0 0.0
    %998 = vmatpush1.msra.mxu0 0.0
    %999 = vmatprep.subr.mxu0 0.0
    %1000 = vmatpush1.msra.mxu0 0.0
    %1001 = vmatprep.subr.mxu0 0.0
    %1002 = vmatpush1.msra.mxu0 0.0
    %1003 = vmatprep.subr.mxu0 0.0
    %1004 = vmatpush1.msra.mxu0 0.0
    %1005 = vmatprep.subr.mxu0 0.0
    %1006 = vmatpush1.msra.mxu0 0.0
    %1007 = vmatprep.subr.mxu0 0.0
    %1008 = vmatpush1.msra.mxu0 0.0
    %1009 = vmatprep.subr.mxu0 0.0
    %1010 = vmatpush1.msra.mxu0 0.0
    %1011 = vmatprep.subr.mxu0 0.0
    %1012 = vmatpush1.msra.mxu0 0.0
    %1013 = vmatprep.subr.mxu0 0.0
    %1014 = vmatpush1.msra.mxu0 0.0
    %1015 = vmatprep.subr.mxu0 0.0
    %1016 = vmatpush1.msra.mxu0 0.0
    %1017 = vmatprep.subr.mxu0 0.0
    %1018 = vmatpush1.msra.mxu0 0.0
    %1019 = vmatprep.subr.mxu0 0.0
    %1020 = vmatpush1.msra.mxu0 0.0
    %1021 = vmatprep.subr.mxu0 0.0
    %1022 = vmatpush1.msra.mxu0 0.0
    %1023 = vmatprep.subr.mxu0 0.0
    %1024 = vmatpush1.msra.mxu0 0.0
    %1025 = vmatprep.subr.mxu0 0.0
    %1026 = vmatpush1.msra.mxu0 0.0
    %1027 = vmatprep.subr.mxu0 0.0
    %1028 = vmatpush1.msra.mxu0 0.0
    %1029 = vmatprep.subr.mxu0 0.0
    %1030 = vmatpush1.msra.mxu0 0.0
    %1031 = vmatprep.subr.mxu0 0.0
    %1032 = vmatpush1.msra.mxu0 0.0
    %1033 = vmatprep.subr.mxu0 0.0
    %1034 = vmatpush1.msra.mxu0 0.0
    %1035 = vmatprep.subr.mxu0 0.0
    %1036 = vmatpush1.msra.mxu0 0.0
    %1037 = vmatprep.subr.mxu0 0.0
    %1038 = vmatpush1.msra.mxu0 0.0
    %1039 = vmatprep.subr.mxu0 0.0
    %1040 = vmatpush1.msra.mxu0 0.0
    %1041 = vmatprep.subr.mxu0 0.0
    %1042 = vmatpush1.msra.mxu0 0.0
    %1043 = vmatprep.mubr.f32.mxu0 0.0
    %1044 = vmatmul.mubr.f32.gmra.mrb[0].mxu0 %v977
    %v1045 = vpop.f32.mrb[0].mxu0
    %v1046 = vadd.f32 %v240, %v1045
    %v1047 = vpop.f32.mrb[0].mxu0
    %1048 = vdwg.mxu0
    %v1050 = vrot.slane %v1046, 2
    %v1052 = vadd.f32 %v230, %v1050
    %v1053 = vxor.u32 %v1052, 2147483648
    %v1054 = vmul.f32 %v1053, 1.442695
    %v1055 = vpow.pop %v1054
    %v1056 = vadd.f32 %v1055, 1.0
    %v1057 = vrcp.pop %v1056
    %v1058 = vmul.f32 1.0, %v1057
    %1059 = vrot.lane.b32.xlu0 %v1050, 96
    %v1060 = vpop.permute.xlu0 %1059
    %v1062 = vmul.f32 %v1058, %v1060
    %1064 = vrot.lane.b32.xlu0 %v1062, 32
    %v1065 = vpop.permute.xlu0 %1064
    %v1067 = vadd.f32 %v230, %v1065
    %v1068 = vtanh.pop %v1067
    %v1069 = vsub.f32 1.0, %v1058
    %1071 = vrot.lane.b32.xlu0 %v1068, 112
    %v1072 = vpop.permute.xlu0 %1071
    %v1074 = vmul.f32 %v1069, %v1072
    %v1075 = vrot.slane %v972, 6
    %v1077 = vmul.f32 %v1058, %v1075
    %v1078 = vadd.f32 %v1074, %v1077
    %v1081 = vrot.slane %v1078, 6
    %1082 = vrot.lane.b32.xlu0 %v1081, 112
    %v1083 = vpop.permute.xlu0 %1082
    %vm1085 = vcmask 64512
    %v1086 = vsel %vm1085, %v344, %v1083
    %1087 = vrot.lane.b32.xlu0 %v446, 112
    %v1088 = vpop.permute.xlu0 %1087
    %v1090 = vrot.slane %v972, 2
    %1091 = vrot.lane.b32.xlu0 %v1090, 112
    %v1092 = vpop.permute.xlu0 %1091
    %v1094 = vsel %vm1085, %v1088, %v1092
    %1095 = vrot.lane.b32.xlu0 %v552, 112
    %v1096 = vpop.permute.xlu0 %1095
    %1098 = vrot.lane.b32.xlu0 %v969, 112
    %v1099 = vpop.permute.xlu0 %1098
    %v1101 = vsel %vm1085, %v1096, %v1099
    %1102 = vrot.lane.b32.xlu0 %v658, 112
    %v1103 = vpop.permute.xlu0 %1102
    %v1105 = vrot.slane %v761, 2
    %1106 = vrot.lane.b32.xlu0 %v1105, 112
    %v1107 = vpop.permute.xlu0 %1106
    %v1109 = vsel %vm1085, %v1103, %v1107
    %v1112 = vsel %vm1085, %v764, %v662
    %1113 = vrot.lane.b32.xlu0 %v866, 112
    %v1114 = vpop.permute.xlu0 %1113
    %v1116 = vrot.slane %v552, 2
    %1117 = vrot.lane.b32.xlu0 %v1116, 112
    %v1118 = vpop.permute.xlu0 %1117
    %v1120 = vsel %vm1085, %v1114, %v1118
    %1121 = vrot.lane.b32.xlu0 %v972, 112
    %v1122 = vpop.permute.xlu0 %1121
    %1124 = vrot.lane.b32.xlu0 %v549, 112
    %v1125 = vpop.permute.xlu0 %1124
    %v1127 = vsel %vm1085, %v1122, %v1125
    %1128 = vrot.lane.b32.xlu0 %v1078, 112
    %v1129 = vpop.permute.xlu0 %1128
    %v1131 = vrot.slane %v341, 2
    %1132 = vrot.lane.b32.xlu0 %v1131, 112
    %v1133 = vpop.permute.xlu0 %1132
    %v1135 = vsel %vm1085, %v1129, %v1133
    %v1137 = vrot.slane %v1094, 2
    %v1140 = vrot.slane %v1101, 4
    %v1143 = vrot.slane %v1109, 6
    %v1146 = vrot.slane %v1120, 2
    %v1149 = vrot.slane %v1127, 4
    %v1152 = vrot.slane %v1135, 6
    %v1154 = vld [vmem:[#allocation7] sm:$0xff]
    %v1155 = vld [vmem:[#allocation7 + $0x8] sm:$0xff]
    %v1156 = vld [vmem:[%s6] sm:$0x1]
    %v1158 = vlaneseq
    %v1159 = vshrl.u32 %v1158, 7
    %v1160 = vsub.s32 0, %v1159
    %v1161 = vrot.slane %v1156, %v1160
    %v1165 = vcombine.low %v1086, %v1137
    %v1166 = vcombine.low %v1140, %v1143
    %v1168 = vunpack.c.l.s4 1983009808
    %v1169 = vunpack.c.0.s8 %v1168
    %v1170 = vlaneseq
    %v1171 = vshrl.u32 %v1170, 7
    %v1172 = vsub.s32 %v1169, %v1171
    %v1173 = vrot.slane %v1165, %v1172
    %v1175 = vunpack.c.l.s4 1983009808
    %v1176 = vunpack.c.0.s8 %v1175
    %v1177 = vlaneseq
    %v1178 = vshrl.u32 %v1177, 7
    %v1179 = vsub.s32 %v1176, %v1178
    %v1180 = vrot.slane %v1166, %v1179
    %v1181 = vcombine.low %v1173, %v1180
    %v1182 = vcombine.low %v1112, %v1146
    %v1183 = vcombine.low %v1149, %v1152
    %v1185 = vunpack.c.l.s4 1983009808
    %v1186 = vunpack.c.0.s8 %v1185
    %v1187 = vlaneseq
    %v1188 = vshrl.u32 %v1187, 7
    %v1189 = vsub.s32 %v1186, %v1188
    %v1190 = vrot.slane %v1182, %v1189
    %v1192 = vunpack.c.l.s4 1983009808
    %v1193 = vunpack.c.0.s8 %v1192
    %v1194 = vlaneseq
    %v1195 = vshrl.u32 %v1194, 7
    %v1196 = vsub.s32 %v1193, %v1195
    %v1197 = vrot.slane %v1183, %v1196
    %v1198 = vcombine.low %v1190, %v1197
    %v1199 = vsel %vm242, %v1181, 0
    %v1201 = vsel %vm242, %v1198, 0
    %1203 = vmatprep.subr.mxu0 0.0
    %1204 = vmatpush1.msra.mxu0 %v1154
    %1205 = vmatprep.subr.mxu0 0.0
    %1206 = vmatpush1.msra.mxu0 %v1155
    %1207 = vmatprep.subr.mxu0 0.0
    %1208 = vmatpush1.msra.mxu0 0.0
    %1209 = vmatprep.subr.mxu0 0.0
    %1210 = vmatpush1.msra.mxu0 0.0
    %1211 = vmatprep.subr.mxu0 0.0
    %1212 = vmatpush1.msra.mxu0 0.0
    %1213 = vmatprep.subr.mxu0 0.0
    %1214 = vmatpush1.msra.mxu0 0.0
    %1215 = vmatprep.subr.mxu0 0.0
    %1216 = vmatpush1.msra.mxu0 0.0
    %1217 = vmatprep.subr.mxu0 0.0
    %1218 = vmatpush1.msra.mxu0 0.0
    %1219 = vmatprep.subr.mxu0 0.0
    %1220 = vmatpush1.msra.mxu0 0.0
    %1221 = vmatprep.subr.mxu0 0.0
    %1222 = vmatpush1.msra.mxu0 0.0
    %1223 = vmatprep.subr.mxu0 0.0
    %1224 = vmatpush1.msra.mxu0 0.0
    %1225 = vmatprep.subr.mxu0 0.0
    %1226 = vmatpush1.msra.mxu0 0.0
    %1227 = vmatprep.subr.mxu0 0.0
    %1228 = vmatpush1.msra.mxu0 0.0
    %1229 = vmatprep.subr.mxu0 0.0
    %1230 = vmatpush1.msra.mxu0 0.0
    %1231 = vmatprep.subr.mxu0 0.0
    %1232 = vmatpush1.msra.mxu0 0.0
    %1233 = vmatprep.subr.mxu0 0.0
    %1234 = vmatpush1.msra.mxu0 0.0
    %1235 = vmatprep.subr.mxu0 0.0
    %1236 = vmatpush1.msra.mxu0 0.0
    %1237 = vmatprep.subr.mxu0 0.0
    %1238 = vmatpush1.msra.mxu0 0.0
    %1239 = vmatprep.subr.mxu0 0.0
    %1240 = vmatpush1.msra.mxu0 0.0
    %1241 = vmatprep.subr.mxu0 0.0
    %1242 = vmatpush1.msra.mxu0 0.0
    %1243 = vmatprep.subr.mxu0 0.0
    %1244 = vmatpush1.msra.mxu0 0.0
    %1245 = vmatprep.subr.mxu0 0.0
    %1246 = vmatpush1.msra.mxu0 0.0
    %1247 = vmatprep.subr.mxu0 0.0
    %1248 = vmatpush1.msra.mxu0 0.0
    %1249 = vmatprep.subr.mxu0 0.0
    %1250 = vmatpush1.msra.mxu0 0.0
    %1251 = vmatprep.subr.mxu0 0.0
    %1252 = vmatpush1.msra.mxu0 0.0
    %1253 = vmatprep.subr.mxu0 0.0
    %1254 = vmatpush1.msra.mxu0 0.0
    %1255 = vmatprep.subr.mxu0 0.0
    %1256 = vmatpush1.msra.mxu0 0.0
    %1257 = vmatprep.subr.mxu0 0.0
    %1258 = vmatpush1.msra.mxu0 0.0
    %1259 = vmatprep.subr.mxu0 0.0
    %1260 = vmatpush1.msra.mxu0 0.0
    %1261 = vmatprep.subr.mxu0 0.0
    %1262 = vmatpush1.msra.mxu0 0.0
    %1263 = vmatprep.subr.mxu0 0.0
    %1264 = vmatpush1.msra.mxu0 0.0
    %1265 = vmatprep.subr.mxu0 0.0
    %1266 = vmatpush1.msra.mxu0 0.0
    %1267 = vmatprep.mubr.f32.mxu0 0.0
    %1268 = vmatmul.mubr.f32.gmra.mrb[0].mxu0 %v1199
    %v1269 = vpop.f32.mrb[0].mxu0
    %v1270 = vadd.f32 %v1161, %v1269
    %v1271 = vpop.f32.mrb[0].mxu0
    %1272 = vmatprep.mubr.f32.mxu0 0.0
    %1273 = vmatmul.mubr.f32.gmra.mrb[0].mxu0 %v1201
    %v1274 = vpop.f32.mrb[0].mxu0
    %v1275 = vadd.f32 %v1161, %v1274
    %v1276 = vpop.f32.mrb[0].mxu0
    %1277 = vdwg.mxu0
    %v1278 = vmul.f32 %v1270, 1.442695
    %v1279 = vpow.pop %v1278
    %v1280 = vmul.f32 %v1275, 1.442695
    %v1281 = vpow.pop %v1280
    %v1284 = vcombine.high %v1279, %v1279
    %v1286 = vunpack.c.l.s4 1983009808
    %v1287 = vunpack.c.0.s8 %v1286
    %v1288 = vlaneseq
    %v1289 = vshrl.u32 %v1288, 7
    %v1290 = vsub.s32 %v1287, %v1289
    %v1291 = vrot.slane %v1279, %v1290
    %v1293 = vunpack.c.l.s4 1983009808
    %v1294 = vunpack.c.0.s8 %v1293
    %v1295 = vlaneseq
    %v1296 = vshrl.u32 %v1295, 7
    %v1297 = vsub.s32 %v1294, %v1296
    %v1298 = vrot.slane %v1284, %v1297
    %v1299 = vcombine.high %v1291, %v1291
    %v1300 = vcombine.high %v1298, %v1298
    %v1301 = vcombine.high %v1281, %v1281
    %v1303 = vunpack.c.l.s4 1983009808
    %v1304 = vunpack.c.0.s8 %v1303
    %v1305 = vlaneseq
    %v1306 = vshrl.u32 %v1305, 7
    %v1307 = vsub.s32 %v1304, %v1306
    %v1308 = vrot.slane %v1281, %v1307
    %v1310 = vunpack.c.l.s4 1983009808
    %v1311 = vunpack.c.0.s8 %v1310
    %v1312 = vlaneseq
    %v1313 = vshrl.u32 %v1312, 7
    %v1314 = vsub.s32 %v1311, %v1313
    %v1315 = vrot.slane %v1301, %v1314
    %v1316 = vcombine.high %v1308, %v1308
    %v1317 = vcombine.high %v1315, %v1315
    %v1318 = vlaneseq
    %v1319 = vshrl.u32 %v1318, 7
    %v1320 = vlaneseq
    %v1321 = vand.u32 %v1320, 127
    %vm1322 = vcmp.lt.s32.totalorder %v1321, %v1319
    %v1323 = vsel %vm1322, 1, 0
    %v1324 = vcvt.s32.f32 %v1323
    %1325 = vset.pattern.permute.xlu0 0
    %1326 = vperm.xlu0 %1325, %v1291
    %v1327 = vpop.permute.xlu0 %1326
    %v1330 = vunpack.c.l.s4 269488144
    %v1331 = vunpack.c.0.s8 %v1330
    %v1332 = vlaneseq
    %v1333 = vshrl.u32 %v1332, 7
    %v1334 = vsub.s32 %v1331, %v1333
    %v1335 = vrot.slane %v1327, %v1334
    %1336 = vset.pattern.permute.xlu0 0
    %1337 = vperm.xlu0 %1336, %v1299
    %v1338 = vpop.permute.xlu0 %1337
    %v1341 = vunpack.c.l.s4 269488144
    %v1342 = vunpack.c.0.s8 %v1341
    %v1343 = vlaneseq
    %v1344 = vshrl.u32 %v1343, 7
    %v1345 = vsub.s32 %v1342, %v1344
    %v1346 = vrot.slane %v1338, %v1345
    %1347 = vset.pattern.permute.xlu0 0
    %1348 = vperm.xlu0 %1347, %v1298
    %v1349 = vpop.permute.xlu0 %1348
    %v1352 = vunpack.c.l.s4 269488144
    %v1353 = vunpack.c.0.s8 %v1352
    %v1354 = vlaneseq
    %v1355 = vshrl.u32 %v1354, 7
    %v1356 = vsub.s32 %v1353, %v1355
    %v1357 = vrot.slane %v1349, %v1356
    %1358 = vset.pattern.permute.xlu0 0
    %1359 = vperm.xlu0 %1358, %v1300
    %v1360 = vpop.permute.xlu0 %1359
    %v1363 = vunpack.c.l.s4 269488144
    %v1364 = vunpack.c.0.s8 %v1363
    %v1365 = vlaneseq
    %v1366 = vshrl.u32 %v1365, 7
    %v1367 = vsub.s32 %v1364, %v1366
    %v1368 = vrot.slane %v1360, %v1367
    %1369 = vset.pattern.permute.xlu0 0
    %1370 = vperm.xlu0 %1369, %v1308
    %v1371 = vpop.permute.xlu0 %1370
    %v1374 = vunpack.c.l.s4 269488144
    %v1375 = vunpack.c.0.s8 %v1374
    %v1376 = vlaneseq
    %v1377 = vshrl.u32 %v1376, 7
    %v1378 = vsub.s32 %v1375, %v1377
    %v1379 = vrot.slane %v1371, %v1378
    %1380 = vset.pattern.permute.xlu0 0
    %1381 = vperm.xlu0 %1380, %v1316
    %v1382 = vpop.permute.xlu0 %1381
    %v1385 = vunpack.c.l.s4 269488144
    %v1386 = vunpack.c.0.s8 %v1385
    %v1387 = vlaneseq
    %v1388 = vshrl.u32 %v1387, 7
    %v1389 = vsub.s32 %v1386, %v1388
    %v1390 = vrot.slane %v1382, %v1389
    %1391 = vset.pattern.permute.xlu0 0
    %1392 = vperm.xlu0 %1391, %v1315
    %v1393 = vpop.permute.xlu0 %1392
    %v1396 = vunpack.c.l.s4 269488144
    %v1397 = vunpack.c.0.s8 %v1396
    %v1398 = vlaneseq
    %v1399 = vshrl.u32 %v1398, 7
    %v1400 = vsub.s32 %v1397, %v1399
    %v1401 = vrot.slane %v1393, %v1400
    %1402 = vset.pattern.permute.xlu0 0
    %1403 = vperm.xlu0 %1402, %v1317
    %v1404 = vpop.permute.xlu0 %1403
    %v1407 = vunpack.c.l.s4 269488144
    %v1408 = vunpack.c.0.s8 %v1407
    %v1409 = vlaneseq
    %v1410 = vshrl.u32 %v1409, 7
    %v1411 = vsub.s32 %v1408, %v1410
    %v1412 = vrot.slane %v1404, %v1411
    %v1413 = vmul.f32 %v1335, %v1086
    %v1414 = vmul.f32 %v1346, %v1137
    %v1415 = vmul.f32 %v1357, %v1140
    %v1416 = vmul.f32 %v1368, %v1143
    %v1417 = vmul.f32 %v1379, %v1112
    %v1418 = vmul.f32 %v1390, %v1146
    %v1419 = vmul.f32 %v1401, %v1149
    %v1420 = vmul.f32 %v1412, %v1152
    %v1421 = vcombine.low %v1413, %v1414
    %v1423 = vunpack.c.l.s4 1934713408
    %v1424 = vunpack.c.0.s8 %v1423
    %v1425 = vlaneseq
    %v1426 = vshrl.u32 %v1425, 7
    %v1427 = vsub.s32 %v1424, %v1426
    %v1428 = vrot.slane %v1421, %v1427
    %v1429 = vcombine.high %v1428, 0.0
    %v1430 = vcombine.low %v1415, %v1416
    %v1432 = vunpack.c.l.s4 1934713408
    %v1433 = vunpack.c.0.s8 %v1432
    %v1434 = vlaneseq
    %v1435 = vshrl.u32 %v1434, 7
    %v1436 = vsub.s32 %v1433, %v1435
    %v1437 = vrot.slane %v1430, %v1436
    %v1438 = vcombine.high %v1437, 0.0
    %v1439 = vcombine.low %v1417, %v1418
    %v1441 = vunpack.c.l.s4 1934713408
    %v1442 = vunpack.c.0.s8 %v1441
    %v1443 = vlaneseq
    %v1444 = vshrl.u32 %v1443, 7
    %v1445 = vsub.s32 %v1442, %v1444
    %v1446 = vrot.slane %v1439, %v1445
    %v1447 = vcombine.high %v1446, 0.0
    %v1448 = vcombine.low %v1419, %v1420
    %v1450 = vunpack.c.l.s4 1934713408
    %v1451 = vunpack.c.0.s8 %v1450
    %v1452 = vlaneseq
    %v1453 = vshrl.u32 %v1452, 7
    %v1454 = vsub.s32 %v1451, %v1453
    %v1455 = vrot.slane %v1448, %v1454
    %v1456 = vcombine.high %v1455, 0.0
    %v1461 = vcombine.low %v1428, %v1437
    %v1462 = vcombine.low %v1446, %v1455
    %v1464 = vunpack.c.l.s4 1983009808
    %v1465 = vunpack.c.0.s8 %v1464
    %v1466 = vlaneseq
    %v1467 = vshrl.u32 %v1466, 7
    %v1468 = vsub.s32 %v1465, %v1467
    %v1469 = vrot.slane %v1461, %v1468
    %v1471 = vunpack.c.l.s4 1983009808
    %v1472 = vunpack.c.0.s8 %v1471
    %v1473 = vlaneseq
    %v1474 = vshrl.u32 %v1473, 7
    %v1475 = vsub.s32 %v1472, %v1474
    %v1476 = vrot.slane %v1462, %v1475
    %v1477 = vcombine.low %v1469, %v1476
    %v1483 = vcombine.low %v1429, %v1438
    %v1484 = vcombine.low %v1447, %v1456
    %v1486 = vunpack.c.l.s4 1983009808
    %v1487 = vunpack.c.0.s8 %v1486
    %v1488 = vlaneseq
    %v1489 = vshrl.u32 %v1488, 7
    %v1490 = vsub.s32 %v1487, %v1489
    %v1491 = vrot.slane %v1483, %v1490
    %v1493 = vunpack.c.l.s4 1983009808
    %v1494 = vunpack.c.0.s8 %v1493
    %v1495 = vlaneseq
    %v1496 = vshrl.u32 %v1495, 7
    %v1497 = vsub.s32 %v1494, %v1496
    %v1498 = vrot.slane %v1484, %v1497
    %v1499 = vcombine.low %v1491, %v1498
    %1500 = vrot.lane.b32.xlu0 %v1499, 16
    %v1501 = vpop.permute.xlu0 %1500
    %v1503 = vsel %vm242, %v1477, %v1501
    %v1505 = vunpack.c.l.s4 1983009808
    %v1506 = vunpack.c.0.s8 %v1505
    %v1507 = vlaneseq
    %v1508 = vshrl.u32 %v1507, 7
    %v1509 = vsub.s32 %v1506, %v1508
    %v1510 = vrot.slane %v1291, %v1509
    %v1512 = vunpack.c.l.s4 1983009808
    %v1513 = vunpack.c.0.s8 %v1512
    %v1514 = vlaneseq
    %v1515 = vshrl.u32 %v1514, 7
    %v1516 = vsub.s32 %v1513, %v1515
    %v1517 = vrot.slane %v1299, %v1516
    %v1519 = vunpack.c.l.s4 1983009808
    %v1520 = vunpack.c.0.s8 %v1519
    %v1521 = vlaneseq
    %v1522 = vshrl.u32 %v1521, 7
    %v1523 = vsub.s32 %v1520, %v1522
    %v1524 = vrot.slane %v1298, %v1523
    %v1526 = vunpack.c.l.s4 1983009808
    %v1527 = vunpack.c.0.s8 %v1526
    %v1528 = vlaneseq
    %v1529 = vshrl.u32 %v1528, 7
    %v1530 = vsub.s32 %v1527, %v1529
    %v1531 = vrot.slane %v1300, %v1530
    %v1533 = vunpack.c.l.s4 1983009808
    %v1534 = vunpack.c.0.s8 %v1533
    %v1535 = vlaneseq
    %v1536 = vshrl.u32 %v1535, 7
    %v1537 = vsub.s32 %v1534, %v1536
    %v1538 = vrot.slane %v1308, %v1537
    %v1540 = vunpack.c.l.s4 1983009808
    %v1541 = vunpack.c.0.s8 %v1540
    %v1542 = vlaneseq
    %v1543 = vshrl.u32 %v1542, 7
    %v1544 = vsub.s32 %v1541, %v1543
    %v1545 = vrot.slane %v1316, %v1544
    %v1547 = vunpack.c.l.s4 1983009808
    %v1548 = vunpack.c.0.s8 %v1547
    %v1549 = vlaneseq
    %v1550 = vshrl.u32 %v1549, 7
    %v1551 = vsub.s32 %v1548, %v1550
    %v1552 = vrot.slane %v1315, %v1551
    %v1554 = vunpack.c.l.s4 1983009808
    %v1555 = vunpack.c.0.s8 %v1554
    %v1556 = vlaneseq
    %v1557 = vshrl.u32 %v1556, 7
    %v1558 = vsub.s32 %v1555, %v1557
    %v1559 = vrot.slane %v1317, %v1558
    %1560 = vset.pattern.permute.xlu0 0
    %1561 = vperm.xlu0 %1560, %v1510
    %v1562 = vpop.permute.xlu0 %1561
    %1563 = vset.pattern.permute.xlu0 0
    %1564 = vperm.xlu0 %1563, %v1517
    %v1565 = vpop.permute.xlu0 %1564
    %1566 = vset.pattern.permute.xlu0 0
    %1567 = vperm.xlu0 %1566, %v1524
    %v1568 = vpop.permute.xlu0 %1567
    %1569 = vset.pattern.permute.xlu0 0
    %1570 = vperm.xlu0 %1569, %v1531
    %v1571 = vpop.permute.xlu0 %1570
    %1572 = vset.pattern.permute.xlu0 0
    %1573 = vperm.xlu0 %1572, %v1538
    %v1574 = vpop.permute.xlu0 %1573
    %1575 = vset.pattern.permute.xlu0 0
    %1576 = vperm.xlu0 %1575, %v1545
    %v1577 = vpop.permute.xlu0 %1576
    %1578 = vset.pattern.permute.xlu0 0
    %1579 = vperm.xlu0 %1578, %v1552
    %v1580 = vpop.permute.xlu0 %1579
    %1581 = vset.pattern.permute.xlu0 0
    %1582 = vperm.xlu0 %1581, %v1559
    %v1583 = vpop.permute.xlu0 %1582
    %v1584 = vlaneseq
    %v1585 = vshrl.u32 %v1584, 7
    %v1586 = vsub.s32 %v1321, %v1585
    %v1587 = vrot.slane %v1562, %v1586
    %v1588 = vlaneseq
    %v1589 = vshrl.u32 %v1588, 7
    %v1590 = vsub.s32 %v1321, %v1589
    %v1591 = vrot.slane %v1565, %v1590
    %v1592 = vlaneseq
    %v1593 = vshrl.u32 %v1592, 7
    %v1594 = vsub.s32 %v1321, %v1593
    %v1595 = vrot.slane %v1568, %v1594
    %v1596 = vlaneseq
    %v1597 = vshrl.u32 %v1596, 7
    %v1598 = vsub.s32 %v1321, %v1597
    %v1599 = vrot.slane %v1571, %v1598
    %v1600 = vlaneseq
    %v1601 = vshrl.u32 %v1600, 7
    %v1602 = vsub.s32 %v1321, %v1601
    %v1603 = vrot.slane %v1574, %v1602
    %v1604 = vlaneseq
    %v1605 = vshrl.u32 %v1604, 7
    %v1606 = vsub.s32 %v1321, %v1605
    %v1607 = vrot.slane %v1577, %v1606
    %v1608 = vlaneseq
    %v1609 = vshrl.u32 %v1608, 7
    %v1610 = vsub.s32 %v1321, %v1609
    %v1611 = vrot.slane %v1580, %v1610
    %v1612 = vlaneseq
    %v1613 = vshrl.u32 %v1612, 7
    %v1614 = vsub.s32 %v1321, %v1613
    %v1615 = vrot.slane %v1583, %v1614
    %vm1616 = vcmask 1041409
    %v1617 = vsel %vm1616, %v1591, %v1587
    %vm1618 = vcmask 1042434
    %v1619 = vsel %vm1618, %v1595, %v1617
    %vm1620 = vcmask 1043459
    %v1621 = vsel %vm1620, %v1599, %v1619
    %vm1622 = vcmask 1044484
    %v1623 = vsel %vm1622, %v1603, %v1621
    %vm1624 = vcmask 1045509
    %v1625 = vsel %vm1624, %v1607, %v1623
    %vm1626 = vcmask 1046534
    %v1627 = vsel %vm1626, %v1611, %v1625
    %vm1628 = vcmask 1047559
    %v1629 = vsel %vm1628, %v1615, %v1627
    %1632 = vrot.lane.b32.xlu0 %v1503, 2
    %v1633 = vpop.permute.xlu0 %1632
    %vm1635 = vcmask 15360
    %v1636 = vsel %vm1635, %v1629, %v1633
    %v1638 = vsel %vm1085, %v1324, 0
    %1640 = vmatprep.subr.mxu0 0.0
    %1641 = vmatpush1.msra.mxu0 %v1636
    %1642 = vmatprep.subr.mxu0 0.0
    %1643 = vmatpush1.msra.mxu0 0.0
    %1644 = vmatprep.subr.mxu0 0.0
    %1645 = vmatpush1.msra.mxu0 0.0
    %1646 = vmatprep.subr.mxu0 0.0
    %1647 = vmatpush1.msra.mxu0 0.0
    %1648 = vmatprep.subr.mxu0 0.0
    %1649 = vmatpush1.msra.mxu0 0.0
    %1650 = vmatprep.subr.mxu0 0.0
    %1651 = vmatpush1.msra.mxu0 0.0
    %1652 = vmatprep.subr.mxu0 0.0
    %1653 = vmatpush1.msra.mxu0 0.0
    %1654 = vmatprep.subr.mxu0 0.0
    %1655 = vmatpush1.msra.mxu0 0.0
    %1656 = vmatprep.subr.mxu0 0.0
    %1657 = vmatpush1.msra.mxu0 0.0
    %1658 = vmatprep.subr.mxu0 0.0
    %1659 = vmatpush1.msra.mxu0 0.0
    %1660 = vmatprep.subr.mxu0 0.0
    %1661 = vmatpush1.msra.mxu0 0.0
    %1662 = vmatprep.subr.mxu0 0.0
    %1663 = vmatpush1.msra.mxu0 0.0
    %1664 = vmatprep.subr.mxu0 0.0
    %1665 = vmatpush1.msra.mxu0 0.0
    %1666 = vmatprep.subr.mxu0 0.0
    %1667 = vmatpush1.msra.mxu0 0.0
    %1668 = vmatprep.subr.mxu0 0.0
    %1669 = vmatpush1.msra.mxu0 0.0
    %1670 = vmatprep.subr.mxu0 0.0
    %1671 = vmatpush1.msra.mxu0 0.0
    %1672 = vmatprep.subr.mxu0 0.0
    %1673 = vmatpush1.msra.mxu0 0.0
    %1674 = vmatprep.subr.mxu0 0.0
    %1675 = vmatpush1.msra.mxu0 0.0
    %1676 = vmatprep.subr.mxu0 0.0
    %1677 = vmatpush1.msra.mxu0 0.0
    %1678 = vmatprep.subr.mxu0 0.0
    %1679 = vmatpush1.msra.mxu0 0.0
    %1680 = vmatprep.subr.mxu0 0.0
    %1681 = vmatpush1.msra.mxu0 0.0
    %1682 = vmatprep.subr.mxu0 0.0
    %1683 = vmatpush1.msra.mxu0 0.0
    %1684 = vmatprep.subr.mxu0 0.0
    %1685 = vmatpush1.msra.mxu0 0.0
    %1686 = vmatprep.subr.mxu0 0.0
    %1687 = vmatpush1.msra.mxu0 0.0
    %1688 = vmatprep.subr.mxu0 0.0
    %1689 = vmatpush1.msra.mxu0 0.0
    %1690 = vmatprep.subr.mxu0 0.0
    %1691 = vmatpush1.msra.mxu0 0.0
    %1692 = vmatprep.subr.mxu0 0.0
    %1693 = vmatpush1.msra.mxu0 0.0
    %1694 = vmatprep.subr.mxu0 0.0
    %1695 = vmatpush1.msra.mxu0 0.0
    %1696 = vmatprep.subr.mxu0 0.0
    %1697 = vmatpush1.msra.mxu0 0.0
    %1698 = vmatprep.subr.mxu0 0.0
    %1699 = vmatpush1.msra.mxu0 0.0
    %1700 = vmatprep.subr.mxu0 0.0
    %1701 = vmatpush1.msra.mxu0 0.0
    %1702 = vmatprep.subr.mxu0 0.0
    %1703 = vmatpush1.msra.mxu0 0.0
    %1704 = vmatprep.mubr.f32.mxu0 0.0
    %1705 = vmatmul.mubr.f32.gmra.mrb[0].mxu0 %v1638
    %v1706 = vpop.f32.mrb[0].mxu0
    %v1707 = vadd.f32 0.0, %v1706
    %v1708 = vpop.f32.mrb[0].mxu0
    %1709 = vdwg.mxu0
    %v1710 = vadd.f32 %v1707, 1e-09
    %1712 = vrot.lane.b32.xlu0 %v1707, 112
    %v1713 = vpop.permute.xlu0 %1712
    %1714 = vrot.lane.b32.xlu0 %v1707, 126
    %v1715 = vpop.permute.xlu0 %1714
    %1716 = vrot.lane.b32.xlu0 %v1713, 126
    %v1717 = vpop.permute.xlu0 %1716
    %v1720 = vcombine.high %v1715, 0.0
    %v1722 = vunpack.c.l.s4 1983009808
    %v1723 = vunpack.c.0.s8 %v1722
    %v1724 = vlaneseq
    %v1725 = vshrl.u32 %v1724, 7
    %v1726 = vsub.s32 %v1723, %v1725
    %v1727 = vrot.slane %v1715, %v1726
    %v1729 = vunpack.c.l.s4 1983009808
    %v1730 = vunpack.c.0.s8 %v1729
    %v1731 = vlaneseq
    %v1732 = vshrl.u32 %v1731, 7
    %v1733 = vsub.s32 %v1730, %v1732
    %v1734 = vrot.slane %v1720, %v1733
    %v1735 = vcombine.high %v1717, 0.0
    %v1737 = vunpack.c.l.s4 1983009808
    %v1738 = vunpack.c.0.s8 %v1737
    %v1739 = vlaneseq
    %v1740 = vshrl.u32 %v1739, 7
    %v1741 = vsub.s32 %v1738, %v1740
    %v1742 = vrot.slane %v1717, %v1741
    %v1744 = vunpack.c.l.s4 1983009808
    %v1745 = vunpack.c.0.s8 %v1744
    %v1746 = vlaneseq
    %v1747 = vshrl.u32 %v1746, 7
    %v1748 = vsub.s32 %v1745, %v1747
    %v1749 = vrot.slane %v1735, %v1748
    %v1750 = vcombine.low %v1727, %v1742
    %v1751 = vcombine.high %v1727, %v1742
    %v1753 = vunpack.c.l.s4 1934713408
    %v1754 = vunpack.c.0.s8 %v1753
    %v1755 = vlaneseq
    %v1756 = vshrl.u32 %v1755, 7
    %v1757 = vsub.s32 %v1754, %v1756
    %v1758 = vrot.slane %v1750, %v1757
    %v1760 = vunpack.c.l.s4 1934713408
    %v1761 = vunpack.c.0.s8 %v1760
    %v1762 = vlaneseq
    %v1763 = vshrl.u32 %v1762, 7
    %v1764 = vsub.s32 %v1761, %v1763
    %v1765 = vrot.slane %v1751, %v1764
    %v1766 = vcombine.low %v1734, %v1749
    %v1767 = vcombine.high %v1734, %v1749
    %v1769 = vunpack.c.l.s4 1934713408
    %v1770 = vunpack.c.0.s8 %v1769
    %v1771 = vlaneseq
    %v1772 = vshrl.u32 %v1771, 7
    %v1773 = vsub.s32 %v1770, %v1772
    %v1774 = vrot.slane %v1766, %v1773
    %v1776 = vunpack.c.l.s4 1934713408
    %v1777 = vunpack.c.0.s8 %v1776
    %v1778 = vlaneseq
    %v1779 = vshrl.u32 %v1778, 7
    %v1780 = vsub.s32 %v1777, %v1779
    %v1781 = vrot.slane %v1767, %v1780
    %v1782 = vcombine.high %v1758, 0.0
    %v1783 = vcombine.high %v1765, 0.0
    %v1784 = vcombine.high %v1774, 0.0
    %v1785 = vcombine.high %v1781, 0.0
    %v1786 = vrcp.pop %v1710
    %v1787 = vlaneseq
    %v1788 = vshrl.u32 %v1787, 7
    %v1789 = vsub.s32 0, %v1788
    %v1790 = vrot.slane %v1786, %v1789
    %1792 = vbcast.lane.b32.xlu0 %v1790, 256
    %v1793 = vpop.permute.xlu0 %1792
    %v1794 = vlaneseq
    %v1795 = vshrl.u32 %v1794, 7
    %v1796 = vsub.s32 1, %v1795
    %v1797 = vrot.slane %v1786, %v1796
    %1799 = vbcast.lane.b32.xlu0 %v1797, 256
    %v1800 = vpop.permute.xlu0 %1799
    %v1801 = vlaneseq
    %v1802 = vshrl.u32 %v1801, 7
    %v1803 = vsub.s32 2, %v1802
    %v1804 = vrot.slane %v1786, %v1803
    %1806 = vbcast.lane.b32.xlu0 %v1804, 256
    %v1807 = vpop.permute.xlu0 %1806
    %v1808 = vlaneseq
    %v1809 = vshrl.u32 %v1808, 7
    %v1810 = vsub.s32 3, %v1809
    %v1811 = vrot.slane %v1786, %v1810
    %1813 = vbcast.lane.b32.xlu0 %v1811, 256
    %v1814 = vpop.permute.xlu0 %1813
    %v1815 = vlaneseq
    %v1816 = vshrl.u32 %v1815, 7
    %v1817 = vsub.s32 4, %v1816
    %v1818 = vrot.slane %v1786, %v1817
    %1820 = vbcast.lane.b32.xlu0 %v1818, 256
    %v1821 = vpop.permute.xlu0 %1820
    %v1822 = vlaneseq
    %v1823 = vshrl.u32 %v1822, 7
    %v1824 = vsub.s32 5, %v1823
    %v1825 = vrot.slane %v1786, %v1824
    %1827 = vbcast.lane.b32.xlu0 %v1825, 256
    %v1828 = vpop.permute.xlu0 %1827
    %v1829 = vlaneseq
    %v1830 = vshrl.u32 %v1829, 7
    %v1831 = vsub.s32 6, %v1830
    %v1832 = vrot.slane %v1786, %v1831
    %1834 = vbcast.lane.b32.xlu0 %v1832, 256
    %v1835 = vpop.permute.xlu0 %1834
    %v1836 = vlaneseq
    %v1837 = vshrl.u32 %v1836, 7
    %v1838 = vsub.s32 7, %v1837
    %v1839 = vrot.slane %v1786, %v1838
    %1841 = vbcast.lane.b32.xlu0 %v1839, 256
    %v1842 = vpop.permute.xlu0 %1841
    %v1843 = vmul.f32 %v1758, %v1793
    %v1844 = vmul.f32 %v1782, %v1800
    %v1845 = vmul.f32 %v1765, %v1807
    %v1846 = vmul.f32 %v1783, %v1814
    %v1847 = vmul.f32 %v1774, %v1821
    %v1848 = vmul.f32 %v1784, %v1828
    %v1849 = vmul.f32 %v1781, %v1835
    %v1850 = vmul.f32 %v1785, %v1842
    %v1851 = vld [vmem:[#allocation8] sm:$0xff]
    %v1852 = vld [vmem:[#allocation8 + $0x8] sm:$0xff]
    %v1861 = vcombine.low %v1843, %v1844
    %v1862 = vcombine.low %v1845, %v1846
    %v1864 = vunpack.c.l.s4 1983009808
    %v1865 = vunpack.c.0.s8 %v1864
    %v1866 = vlaneseq
    %v1867 = vshrl.u32 %v1866, 7
    %v1868 = vsub.s32 %v1865, %v1867
    %v1869 = vrot.slane %v1861, %v1868
    %v1871 = vunpack.c.l.s4 1983009808
    %v1872 = vunpack.c.0.s8 %v1871
    %v1873 = vlaneseq
    %v1874 = vshrl.u32 %v1873, 7
    %v1875 = vsub.s32 %v1872, %v1874
    %v1876 = vrot.slane %v1862, %v1875
    %v1877 = vcombine.low %v1869, %v1876
    %v1878 = vcombine.low %v1847, %v1848
    %v1879 = vcombine.low %v1849, %v1850
    %v1881 = vunpack.c.l.s4 1983009808
    %v1882 = vunpack.c.0.s8 %v1881
    %v1883 = vlaneseq
    %v1884 = vshrl.u32 %v1883, 7
    %v1885 = vsub.s32 %v1882, %v1884
    %v1886 = vrot.slane %v1878, %v1885
    %v1888 = vunpack.c.l.s4 1983009808
    %v1889 = vunpack.c.0.s8 %v1888
    %v1890 = vlaneseq
    %v1891 = vshrl.u32 %v1890, 7
    %v1892 = vsub.s32 %v1889, %v1891
    %v1893 = vrot.slane %v1879, %v1892
    %v1894 = vcombine.low %v1886, %v1893
    %v1895 = vsel %vm242, %v1877, 0
    %v1897 = vsel %vm242, %v1894, 0
    %1899 = vmatprep.subr.mxu0 0.0
    %1900 = vmatpush1.msra.mxu0 %v1851
    %1901 = vmatprep.subr.mxu0 0.0
    %1902 = vmatpush1.msra.mxu0 %v1852
    %1903 = vmatprep.subr.mxu0 0.0
    %1904 = vmatpush1.msra.mxu0 0.0
    %1905 = vmatprep.subr.mxu0 0.0
    %1906 = vmatpush1.msra.mxu0 0.0
    %1907 = vmatprep.subr.mxu0 0.0
    %1908 = vmatpush1.msra.mxu0 0.0
    %1909 = vmatprep.subr.mxu0 0.0
    %1910 = vmatpush1.msra.mxu0 0.0
    %1911 = vmatprep.subr.mxu0 0.0
    %1912 = vmatpush1.msra.mxu0 0.0
    %1913 = vmatprep.subr.mxu0 0.0
    %1914 = vmatpush1.msra.mxu0 0.0
    %1915 = vmatprep.subr.mxu0 0.0
    %1916 = vmatpush1.msra.mxu0 0.0
    %1917 = vmatprep.subr.mxu0 0.0
    %1918 = vmatpush1.msra.mxu0 0.0
    %1919 = vmatprep.subr.mxu0 0.0
    %1920 = vmatpush1.msra.mxu0 0.0
    %1921 = vmatprep.subr.mxu0 0.0
    %1922 = vmatpush1.msra.mxu0 0.0
    %1923 = vmatprep.subr.mxu0 0.0
    %1924 = vmatpush1.msra.mxu0 0.0
    %1925 = vmatprep.subr.mxu0 0.0
    %1926 = vmatpush1.msra.mxu0 0.0
    %1927 = vmatprep.subr.mxu0 0.0
    %1928 = vmatpush1.msra.mxu0 0.0
    %1929 = vmatprep.subr.mxu0 0.0
    %1930 = vmatpush1.msra.mxu0 0.0
    %1931 = vmatprep.subr.mxu0 0.0
    %1932 = vmatpush1.msra.mxu0 0.0
    %1933 = vmatprep.subr.mxu0 0.0
    %1934 = vmatpush1.msra.mxu0 0.0
    %1935 = vmatprep.subr.mxu0 0.0
    %1936 = vmatpush1.msra.mxu0 0.0
    %1937 = vmatprep.subr.mxu0 0.0
    %1938 = vmatpush1.msra.mxu0 0.0
    %1939 = vmatprep.subr.mxu0 0.0
    %1940 = vmatpush1.msra.mxu0 0.0
    %1941 = vmatprep.subr.mxu0 0.0
    %1942 = vmatpush1.msra.mxu0 0.0
    %1943 = vmatprep.subr.mxu0 0.0
    %1944 = vmatpush1.msra.mxu0 0.0
    %1945 = vmatprep.subr.mxu0 0.0
    %1946 = vmatpush1.msra.mxu0 0.0
    %1947 = vmatprep.subr.mxu0 0.0
    %1948 = vmatpush1.msra.mxu0 0.0
    %1949 = vmatprep.subr.mxu0 0.0
    %1950 = vmatpush1.msra.mxu0 0.0
    %1951 = vmatprep.subr.mxu0 0.0
    %1952 = vmatpush1.msra.mxu0 0.0
    %1953 = vmatprep.subr.mxu0 0.0
    %1954 = vmatpush1.msra.mxu0 0.0
    %1955 = vmatprep.subr.mxu0 0.0
    %1956 = vmatpush1.msra.mxu0 0.0
    %1957 = vmatprep.subr.mxu0 0.0
    %1958 = vmatpush1.msra.mxu0 0.0
    %1959 = vmatprep.subr.mxu0 0.0
    %1960 = vmatpush1.msra.mxu0 0.0
    %1961 = vmatprep.subr.mxu0 0.0
    %1962 = vmatpush1.msra.mxu0 0.0
    %1963 = vmatprep.mubr.f32.mxu0 0.0
    %1964 = vmatmul.mubr.f32.gmra.mrb[0].mxu0 %v1895
    %v1965 = vpop.f32.mrb[0].mxu0
    %v1966 = vadd.f32 0.0, %v1965
    %v1967 = vpop.f32.mrb[0].mxu0
    %1968 = vmatprep.mubr.f32.mxu0 0.0
    %1969 = vmatmul.mubr.f32.gmra.mrb[0].mxu0 %v1897
    %v1970 = vpop.f32.mrb[0].mxu0
    %v1971 = vadd.f32 0.0, %v1970
    %v1972 = vpop.f32.mrb[0].mxu0
    %1973 = vdwg.mxu0
    %1976 = vrot.lane.b32.xlu0 %v1966, 1
    %v1977 = vpop.permute.xlu0 %1976
    %1978 = vrot.lane.b32.xlu0 %v1971, 1
    %v1979 = vpop.permute.xlu0 %1978
    %v1982 = vadd.f32 %v1270, %v1977
    %v1983 = vadd.f32 %v1275, %v1979
    %v1984 = vtanh.pop %v1982
    %v1985 = vtanh.pop %v1983
    %v1986 = vld [vmem:[%s8] sm:$0xff]
    %v1987 = vld [vmem:[%s8 + $0x8] sm:$0x3]
    %v1988 = vld [vmem:[#allocation2] sm:$0x1]
    %v1990 = vlaneseq
    %v1991 = vshrl.u32 %v1990, 7
    %v1992 = vsub.s32 0, %v1991
    %v1993 = vrot.slane %v1988, %v1992
    %1997 = vrot.lane.b32.xlu0 %v1984, 127
    %v1998 = vpop.permute.xlu0 %1997
    %1999 = vrot.lane.b32.xlu0 %v1985, 127
    %v2000 = vpop.permute.xlu0 %1999
    %v2001 = vsel %vm149, %v1998, 0
    %v2003 = vsel %vm149, %v2000, 0
    %v2006 = vsel %vm154, %v1987, 0
    %2008 = vmatprep.subr.mxu0 0.0
    %2009 = vmatpush1.msra.mxu0 %v1986
    %2010 = vmatprep.subr.mxu0 0.0
    %2011 = vmatpush1.msra.mxu0 %v2006
    %2012 = vmatprep.subr.mxu0 0.0
    %2013 = vmatpush1.msra.mxu0 0.0
    %2014 = vmatprep.subr.mxu0 0.0
    %2015 = vmatpush1.msra.mxu0 0.0
    %2016 = vmatprep.subr.mxu0 0.0
    %2017 = vmatpush1.msra.mxu0 0.0
    %2018 = vmatprep.subr.mxu0 0.0
    %2019 = vmatpush1.msra.mxu0 0.0
    %2020 = vmatprep.subr.mxu0 0.0
    %2021 = vmatpush1.msra.mxu0 0.0
    %2022 = vmatprep.subr.mxu0 0.0
    %2023 = vmatpush1.msra.mxu0 0.0
    %2024 = vmatprep.subr.mxu0 0.0
    %2025 = vmatpush1.msra.mxu0 0.0
    %2026 = vmatprep.subr.mxu0 0.0
    %2027 = vmatpush1.msra.mxu0 0.0
    %2028 = vmatprep.subr.mxu0 0.0
    %2029 = vmatpush1.msra.mxu0 0.0
    %2030 = vmatprep.subr.mxu0 0.0
    %2031 = vmatpush1.msra.mxu0 0.0
    %2032 = vmatprep.subr.mxu0 0.0
    %2033 = vmatpush1.msra.mxu0 0.0
    %2034 = vmatprep.subr.mxu0 0.0
    %2035 = vmatpush1.msra.mxu0 0.0
    %2036 = vmatprep.subr.mxu0 0.0
    %2037 = vmatpush1.msra.mxu0 0.0
    %2038 = vmatprep.subr.mxu0 0.0
    %2039 = vmatpush1.msra.mxu0 0.0
    %2040 = vmatprep.subr.mxu0 0.0
    %2041 = vmatpush1.msra.mxu0 0.0
    %2042 = vmatprep.subr.mxu0 0.0
    %2043 = vmatpush1.msra.mxu0 0.0
    %2044 = vmatprep.subr.mxu0 0.0
    %2045 = vmatpush1.msra.mxu0 0.0
    %2046 = vmatprep.subr.mxu0 0.0
    %2047 = vmatpush1.msra.mxu0 0.0
    %2048 = vmatprep.subr.mxu0 0.0
    %2049 = vmatpush1.msra.mxu0 0.0
    %2050 = vmatprep.subr.mxu0 0.0
    %2051 = vmatpush1.msra.mxu0 0.0
    %2052 = vmatprep.subr.mxu0 0.0
    %2053 = vmatpush1.msra.mxu0 0.0
    %2054 = vmatprep.subr.mxu0 0.0
    %2055 = vmatpush1.msra.mxu0 0.0
    %2056 = vmatprep.subr.mxu0 0.0
    %2057 = vmatpush1.msra.mxu0 0.0
    %2058 = vmatprep.subr.mxu0 0.0
    %2059 = vmatpush1.msra.mxu0 0.0
    %2060 = vmatprep.subr.mxu0 0.0
    %2061 = vmatpush1.msra.mxu0 0.0
    %2062 = vmatprep.subr.mxu0 0.0
    %2063 = vmatpush1.msra.mxu0 0.0
    %2064 = vmatprep.subr.mxu0 0.0
    %2065 = vmatpush1.msra.mxu0 0.0
    %2066 = vmatprep.subr.mxu0 0.0
    %2067 = vmatpush1.msra.mxu0 0.0
    %2068 = vmatprep.subr.mxu0 0.0
    %2069 = vmatpush1.msra.mxu0 0.0
    %2070 = vmatprep.subr.mxu0 0.0
    %2071 = vmatpush1.msra.mxu0 0.0
    %2072 = vmatprep.mubr.f32.mxu0 0.0
    %2073 = vmatmul.mubr.f32.gmra.mrb[0].mxu0 %v2001
    %v2074 = vpop.f32.mrb[0].mxu0
    %v2075 = vadd.f32 %v1993, %v2074
    %v2076 = vpop.f32.mrb[0].mxu0
    %2077 = vmatprep.mubr.f32.mxu0 0.0
    %2078 = vmatmul.mubr.f32.gmra.mrb[0].mxu0 %v2003
    %v2079 = vpop.f32.mrb[0].mxu0
    %v2080 = vadd.f32 %v1993, %v2079
    %v2081 = vpop.f32.mrb[0].mxu0
    %2082 = vdwg.mxu0
    %v2085 = vcombine.high %v2075, %v2075
    %v2087 = vunpack.c.l.s4 1983009808
    %v2088 = vunpack.c.0.s8 %v2087
    %v2089 = vlaneseq
    %v2090 = vshrl.u32 %v2089, 7
    %v2091 = vsub.s32 %v2088, %v2090
    %v2092 = vrot.slane %v2075, %v2091
    %v2094 = vunpack.c.l.s4 1983009808
    %v2095 = vunpack.c.0.s8 %v2094
    %v2096 = vlaneseq
    %v2097 = vshrl.u32 %v2096, 7
    %v2098 = vsub.s32 %v2095, %v2097
    %v2099 = vrot.slane %v2085, %v2098
    %v2100 = vcombine.high %v2092, %v2092
    %v2101 = vcombine.high %v2099, %v2099
    %v2102 = vcombine.high %v2080, %v2080
    %v2104 = vunpack.c.l.s4 1983009808
    %v2105 = vunpack.c.0.s8 %v2104
    %v2106 = vlaneseq
    %v2107 = vshrl.u32 %v2106, 7
    %v2108 = vsub.s32 %v2105, %v2107
    %v2109 = vrot.slane %v2080, %v2108
    %v2111 = vunpack.c.l.s4 1983009808
    %v2112 = vunpack.c.0.s8 %v2111
    %v2113 = vlaneseq
    %v2114 = vshrl.u32 %v2113, 7
    %v2115 = vsub.s32 %v2112, %v2114
    %v2116 = vrot.slane %v2102, %v2115
    %v2117 = vcombine.high %v2109, %v2109
    %v2118 = vcombine.high %v2116, %v2116
    %vm2127 = vcmask 1024
    %v2128 = vsel %vm2127, %v2092, 0.0
    %v2129 = vsel %vm2127, %v2100, 0.0
    %v2130 = vadd.f32 %v2128, %v2129
    %v2131 = vsel %vm2127, %v2099, 0.0
    %v2132 = vadd.f32 %v2130, %v2131
    %v2133 = vsel %vm2127, %v2101, 0.0
    %v2134 = vadd.f32 %v2132, %v2133
    %v2135 = vsel %vm2127, %v2109, 0.0
    %v2136 = vadd.f32 %v2134, %v2135
    %v2137 = vsel %vm2127, %v2117, 0.0
    %v2138 = vadd.f32 %v2136, %v2137
    %v2139 = vsel %vm2127, %v2116, 0.0
    %v2140 = vadd.f32 %v2138, %v2139
    %v2141 = vsel %vm2127, %v2118, 0.0
    %v2142 = vadd.f32 %v2140, %v2141
    %2143 = vst.msk [vmem:[%s10] sm:$0x3] %vm2127, %v2142
    // Predicated region
    $region58: #{tpu_custom_call.1} parent=1 // pred_check
      _
    $region59: #{tpu_custom_call.1} parent=1 // pred_check_branch
      %2145 = sbr.rel (0) target = $region61
    $region60: #{tpu_custom_call.1} parent=1 // pred_region
      _
    $region61: #{tpu_custom_call.1} parent=1 // pred_fallthru
      _
    // Predicated region
    $region62: #{tpu_custom_call.1} parent=1 // pred_check
      _
    $region63: #{tpu_custom_call.1} parent=1 // pred_check_branch
      %2147 = sbr.rel (0) target = $region65
    $region64: #{tpu_custom_call.1} parent=1 // pred_region
      _
    $region65: #{tpu_custom_call.1} parent=1 // pred_fallthru
      _
    %2148 = vsyncpa [#allocation4], 1
    %2149 = vsyncpa [#allocation6], 1
    %2150 = vsyncpa [#allocation9], 1

</llo_original>
